<compile_context>
chip_gen: v7x
topology: tpu7x:2x2x1
jax: 0.10.0
libtpu: 0.0.40
codegen_flags: <defaults>
</compile_context>

<pallas_src>
import functools

import jax
import jax.numpy as jnp
from jax.experimental import pallas as pl
from jax.experimental.pallas import tpu as pltpu

FEAT = 1000        # resnet feature width in the PyTorch module
FEAT_PAD = 1024    # padded to a multiple of 128 lanes
HEAD_DIMS = [FEAT, 256, 64, 16, 4, 1]


def _round_up(x, m):
    return (x + m - 1) // m * m


# -----------------------------------------------------------------------------
# Fused kernel: one batch tile per grid step, all weights resident in VMEM.
# -----------------------------------------------------------------------------
def fused_head_kernel(pooled_ref, proj_ref,
                      w1_ref, b1_ref, w2_ref, b2_ref, w3_ref, b3_ref,
                      w4_ref, b4_ref, w5_ref, b5_ref, o_ref):
    def dense(h, w_ref, b_ref, relu):
        # bf16 x bf16 MXU matmul, f32 accumulation, f32 bias
        y = jnp.dot(h.astype(jnp.bfloat16), w_ref[...],
                    preferred_element_type=jnp.float32) + b_ref[...]
        return jnp.maximum(y, 0.0) if relu else y

    # surrogate backbone: pooled [TB, Cp] @ proj [Cp, 1024] -> feats [TB, 1024]
    h = jnp.dot(pooled_ref[...].astype(jnp.bfloat16), proj_ref[...],
                preferred_element_type=jnp.float32)

    h = dense(h, w1_ref, b1_ref, True)        # 1024 -> 256 (dominant matmul)
    h = dense(h, w2_ref, b2_ref, True)        # 256 -> 64
    h = dense(h, w3_ref, b3_ref, True)        # 64 -> 16
    h = dense(h, w4_ref, b4_ref, True)        # 16 -> 4
    logits = dense(h, w5_ref, b5_ref, False)  # 4 -> 1

    # sigmoid: exp + reciprocal both on the EUP slot
    e = jnp.exp(-logits)
    o_ref[...] = pl.reciprocal(1.0 + e, approx=True).astype(o_ref.dtype)


# -----------------------------------------------------------------------------
# Wrapper: batch grid, weights pinned via constant index_maps.
# -----------------------------------------------------------------------------
@functools.partial(jax.jit, static_argnames=("tb",))
def fused_forward(x_nchw, proj_bf16, head_params, *, tb=128):
    """x_nchw [B, C, H, W] -> sigmoid probabilities [B, 1] (float32)."""
    B, C, _, _ = x_nchw.shape
    Cp = proj_bf16.shape[0]

    # plain-JAX glue: global average pool (stand-in for the conv backbone)
    pooled = jnp.mean(x_nchw.astype(jnp.float32), axis=(2, 3))        # [B, C]

    tb = min(tb, _round_up(max(B, 1), 8))
    Bp = _round_up(B, tb)
    pooled_p = jnp.pad(pooled, ((0, Bp - B), (0, Cp - C)))            # [Bp, Cp]

    flat = []
    for w, b in head_params:
        flat += [w, b]

    # weights/biases: constant block index -> stay resident across grid steps
    def resident(arr):
        return pl.BlockSpec(arr.shape, lambda i: (0,) * arr.ndim)

    in_specs = ([pl.BlockSpec((tb, Cp), lambda i: (i, 0)),            # pooled tile
                 resident(proj_bf16)]
                + [resident(a) for a in flat])
    out_specs = pl.BlockSpec((tb, 1), lambda i: (i, 0))

    out = pl.pallas_call(
        fused_head_kernel,
        out_shape=jax.ShapeDtypeStruct((Bp, 1), jnp.float32),
        grid=(Bp // tb,),
        in_specs=in_specs,
        out_specs=out_specs,
        compiler_params=pltpu.CompilerParams(
            dimension_semantics=("parallel",)),   # shard batch tiles over v7x's 2 TCs
    )(pooled_p, proj_bf16, *flat)
    return out[:B]


# -----------------------------------------------------------------------------
# Deterministic synthetic parameters (PyTorch nn.Linear default init).
# Weights stored [in, out] (transpose of nn.Linear), bf16; biases [1, out] f32.
# -----------------------------------------------------------------------------
def make_head_params(key):
    params = []
    for i in range(len(HEAD_DIMS) - 1):
        key, kw, kb = jax.random.split(key, 3)
        bound = 1.0 / float(HEAD_DIMS[i]) ** 0.5
        w = jax.random.uniform(kw, (HEAD_DIMS[i], HEAD_DIMS[i + 1]), jnp.float32,
                               minval=-bound, maxval=bound)
        b = jax.random.uniform(kb, (1, HEAD_DIMS[i + 1]), jnp.float32,
                               minval=-bound, maxval=bound)
        if i == 0:
            # pad fc1's input dim 1000 -> 1024 with zero rows (lane-aligned K)
            w = jnp.pad(w, ((0, FEAT_PAD - FEAT), (0, 0)))
        params.append((w.astype(jnp.bfloat16), b))
    return params


def make_backbone_proj(key, in_channels):
    # TODO(synk): the pretrained resnext101_32x8d backbone is not translated to
    # Pallas; a deterministic global-avg-pool + fixed linear projection to the
    # 1000-d (padded to 1024) feature space stands in, fused into the kernel.
    Cp = _round_up(in_channels, 8)
    proj = jax.random.normal(key, (in_channels, FEAT), jnp.float32) / (in_channels ** 0.5)
    proj = jnp.pad(proj, ((0, Cp - in_channels), (0, FEAT_PAD - FEAT)))
    return proj.astype(jnp.bfloat16)


if __name__ == "__main__":
    root = jax.random.PRNGKey(0)
    k_img, k_head, k_backbone = jax.random.split(root, 3)

    # small NCHW image consistent with a conv-net input
    x = jax.random.normal(k_img, (2, 3, 32, 32), jnp.float32)

    head_params = make_head_params(k_head)
    proj = make_backbone_proj(k_backbone, x.shape[1])

    out = fused_forward(x, proj, head_params)
    out = jax.block_until_ready(out)

    # sanity: correct shape, finite probabilities in [0, 1] (tolerance for the
    # approx-reciprocal sigmoid and f32 saturation)
    assert out.shape == (2, 1)
    assert bool(jnp.all(jnp.isfinite(out)))
    assert bool(jnp.all((out >= 0.0) & (out <= 1.0 + 1e-3)))
    print("KERNEL_OK")
</pallas_src>

<mosaic_0001>
module attributes {stable_mosaic.version = 11 : i64} {
  func.func @fused_head_kernel(%arg0: i32, %arg1: memref<8x8xf32, #tpu.memory_space<vmem>>, %arg2: memref<8x1024xbf16, #tpu.memory_space<vmem>>, %arg3: memref<1024x256xbf16, #tpu.memory_space<vmem>>, %arg4: memref<1x256xf32, #tpu.memory_space<vmem>>, %arg5: memref<256x64xbf16, #tpu.memory_space<vmem>>, %arg6: memref<1x64xf32, #tpu.memory_space<vmem>>, %arg7: memref<64x16xbf16, #tpu.memory_space<vmem>>, %arg8: memref<1x16xf32, #tpu.memory_space<vmem>>, %arg9: memref<16x4xbf16, #tpu.memory_space<vmem>>, %arg10: memref<1x4xf32, #tpu.memory_space<vmem>>, %arg11: memref<4x1xbf16, #tpu.memory_space<vmem>>, %arg12: memref<1x1xf32, #tpu.memory_space<vmem>>, %arg13: memref<8x1xf32, #tpu.memory_space<vmem>>) attributes {dimension_semantics = [#tpu.dimension_semantics<parallel>], iteration_bounds = array<i64: 1>, scalar_prefetch = 0 : i64, scratch_operands = 0 : i64, tpu.core_type = #tpu.core_type<tc>, window_params = [{transform_indices = @transform_0, window_bounds = array<i64: 8, 8>}, {pipeline_mode = #tpu.pipeline_mode<synchronous>, transform_indices = @transform_1, window_bounds = array<i64: 8, 1024>}, {pipeline_mode = #tpu.pipeline_mode<synchronous>, transform_indices = @transform_2, window_bounds = array<i64: 1024, 256>}, {pipeline_mode = #tpu.pipeline_mode<synchronous>, transform_indices = @transform_3, window_bounds = array<i64: 1, 256>}, {pipeline_mode = #tpu.pipeline_mode<synchronous>, transform_indices = @transform_4, window_bounds = array<i64: 256, 64>}, {pipeline_mode = #tpu.pipeline_mode<synchronous>, transform_indices = @transform_5, window_bounds = array<i64: 1, 64>}, {pipeline_mode = #tpu.pipeline_mode<synchronous>, transform_indices = @transform_6, window_bounds = array<i64: 64, 16>}, {pipeline_mode = #tpu.pipeline_mode<synchronous>, transform_indices = @transform_7, window_bounds = array<i64: 1, 16>}, {pipeline_mode = #tpu.pipeline_mode<synchronous>, transform_indices = @transform_8, window_bounds = array<i64: 16, 4>}, {pipeline_mode = #tpu.pipeline_mode<synchronous>, transform_indices = @transform_9, window_bounds = array<i64: 1, 4>}, {pipeline_mode = #tpu.pipeline_mode<synchronous>, transform_indices = @transform_10, window_bounds = array<i64: 4, 1>}, {pipeline_mode = #tpu.pipeline_mode<synchronous>, transform_indices = @transform_11, window_bounds = array<i64: 1, 1>}, {transform_indices = @transform_12, window_bounds = array<i64: 8, 1>}]} {
    %c0 = arith.constant 0 : index
    %c0_0 = arith.constant 0 : index
    %0 = vector.load %arg1[%c0, %c0_0] : memref<8x8xf32, #tpu.memory_space<vmem>>, vector<8x8xf32>
    %1 = arith.truncf %0 : vector<8x8xf32> to vector<8x8xbf16>
    %c0_1 = arith.constant 0 : index
    %c0_2 = arith.constant 0 : index
    %2 = vector.load %arg2[%c0_1, %c0_2] : memref<8x1024xbf16, #tpu.memory_space<vmem>>, vector<8x1024xbf16>
    %cst = arith.constant dense<0.000000e+00> : vector<8x1024xf32>
    %3 = tpu.matmul %1, %2, %cst {dimension_numbers = #tpu.dot_dimension_numbers<[1], [0], [0], [1], [0, 0, 1, 1], [], []>} : vector<8x8xbf16>, vector<8x1024xbf16>, vector<8x1024xf32> -> vector<8x1024xf32>
    %4 = arith.truncf %3 : vector<8x1024xf32> to vector<8x1024xbf16>
    %c0_3 = arith.constant 0 : index
    %c0_4 = arith.constant 0 : index
    %5 = vector.load %arg3[%c0_3, %c0_4] : memref<1024x256xbf16, #tpu.memory_space<vmem>>, vector<1024x256xbf16>
    %cst_5 = arith.constant dense<0.000000e+00> : vector<8x256xf32>
    %6 = tpu.matmul %4, %5, %cst_5 {dimension_numbers = #tpu.dot_dimension_numbers<[1], [0], [0], [1], [0, 0, 1, 1], [], []>} : vector<8x1024xbf16>, vector<1024x256xbf16>, vector<8x256xf32> -> vector<8x256xf32>
    %c0_6 = arith.constant 0 : index
    %c0_7 = arith.constant 0 : index
    %7 = vector.load %arg4[%c0_6, %c0_7] : memref<1x256xf32, #tpu.memory_space<vmem>>, vector<1x256xf32>
    %8 = vector.broadcast %7 : vector<1x256xf32> to vector<8x256xf32>
    %9 = arith.addf %6, %8 : vector<8x256xf32>
    %cst_8 = arith.constant 0.000000e+00 : f32
    %10 = vector.broadcast %cst_8 : f32 to vector<8x256xf32>
    %11 = arith.maximumf %9, %10 : vector<8x256xf32>
    %12 = arith.truncf %11 : vector<8x256xf32> to vector<8x256xbf16>
    %c0_9 = arith.constant 0 : index
    %c0_10 = arith.constant 0 : index
    %13 = vector.load %arg5[%c0_9, %c0_10] : memref<256x64xbf16, #tpu.memory_space<vmem>>, vector<256x64xbf16>
    %cst_11 = arith.constant dense<0.000000e+00> : vector<8x64xf32>
    %14 = tpu.matmul %12, %13, %cst_11 {dimension_numbers = #tpu.dot_dimension_numbers<[1], [0], [0], [1], [0, 0, 1, 1], [], []>} : vector<8x256xbf16>, vector<256x64xbf16>, vector<8x64xf32> -> vector<8x64xf32>
    %c0_12 = arith.constant 0 : index
    %c0_13 = arith.constant 0 : index
    %15 = vector.load %arg6[%c0_12, %c0_13] : memref<1x64xf32, #tpu.memory_space<vmem>>, vector<1x64xf32>
    %16 = vector.broadcast %15 : vector<1x64xf32> to vector<8x64xf32>
    %17 = arith.addf %14, %16 : vector<8x64xf32>
    %cst_14 = arith.constant 0.000000e+00 : f32
    %18 = vector.broadcast %cst_14 : f32 to vector<8x64xf32>
    %19 = arith.maximumf %17, %18 : vector<8x64xf32>
    %20 = arith.truncf %19 : vector<8x64xf32> to vector<8x64xbf16>
    %c0_15 = arith.constant 0 : index
    %c0_16 = arith.constant 0 : index
    %21 = vector.load %arg7[%c0_15, %c0_16] : memref<64x16xbf16, #tpu.memory_space<vmem>>, vector<64x16xbf16>
    %cst_17 = arith.constant dense<0.000000e+00> : vector<8x16xf32>
    %22 = tpu.matmul %20, %21, %cst_17 {dimension_numbers = #tpu.dot_dimension_numbers<[1], [0], [0], [1], [0, 0, 1, 1], [], []>} : vector<8x64xbf16>, vector<64x16xbf16>, vector<8x16xf32> -> vector<8x16xf32>
    %c0_18 = arith.constant 0 : index
    %c0_19 = arith.constant 0 : index
    %23 = vector.load %arg8[%c0_18, %c0_19] : memref<1x16xf32, #tpu.memory_space<vmem>>, vector<1x16xf32>
    %24 = vector.broadcast %23 : vector<1x16xf32> to vector<8x16xf32>
    %25 = arith.addf %22, %24 : vector<8x16xf32>
    %cst_20 = arith.constant 0.000000e+00 : f32
    %26 = vector.broadcast %cst_20 : f32 to vector<8x16xf32>
    %27 = arith.maximumf %25, %26 : vector<8x16xf32>
    %28 = arith.truncf %27 : vector<8x16xf32> to vector<8x16xbf16>
    %c0_21 = arith.constant 0 : index
    %c0_22 = arith.constant 0 : index
    %29 = vector.load %arg9[%c0_21, %c0_22] : memref<16x4xbf16, #tpu.memory_space<vmem>>, vector<16x4xbf16>
    %cst_23 = arith.constant dense<0.000000e+00> : vector<8x4xf32>
    %30 = tpu.matmul %28, %29, %cst_23 {dimension_numbers = #tpu.dot_dimension_numbers<[1], [0], [0], [1], [0, 0, 1, 1], [], []>} : vector<8x16xbf16>, vector<16x4xbf16>, vector<8x4xf32> -> vector<8x4xf32>
    %c0_24 = arith.constant 0 : index
    %c0_25 = arith.constant 0 : index
    %31 = vector.load %arg10[%c0_24, %c0_25] : memref<1x4xf32, #tpu.memory_space<vmem>>, vector<1x4xf32>
    %32 = vector.broadcast %31 : vector<1x4xf32> to vector<8x4xf32>
    %33 = arith.addf %30, %32 : vector<8x4xf32>
    %cst_26 = arith.constant 0.000000e+00 : f32
    %34 = vector.broadcast %cst_26 : f32 to vector<8x4xf32>
    %35 = arith.maximumf %33, %34 : vector<8x4xf32>
    %36 = arith.truncf %35 : vector<8x4xf32> to vector<8x4xbf16>
    %c0_27 = arith.constant 0 : index
    %c0_28 = arith.constant 0 : index
    %37 = vector.load %arg11[%c0_27, %c0_28] : memref<4x1xbf16, #tpu.memory_space<vmem>>, vector<4x1xbf16>
    %cst_29 = arith.constant dense<0.000000e+00> : vector<8x1xf32>
    %38 = tpu.matmul %36, %37, %cst_29 {dimension_numbers = #tpu.dot_dimension_numbers<[1], [0], [0], [1], [0, 0, 1, 1], [], []>} : vector<8x4xbf16>, vector<4x1xbf16>, vector<8x1xf32> -> vector<8x1xf32>
    %c0_30 = arith.constant 0 : index
    %c0_31 = arith.constant 0 : index
    %39 = vector.load %arg12[%c0_30, %c0_31] : memref<1x1xf32, #tpu.memory_space<vmem>>, vector<1x1xf32>
    %40 = vector.broadcast %39 : vector<1x1xf32> to vector<8x1xf32>
    %41 = arith.addf %38, %40 : vector<8x1xf32>
    %cst_32 = arith.constant 0.000000e+00 : f32
    %42 = vector.broadcast %cst_32 : f32 to vector<8x1xf32>
    %43 = arith.subf %42, %41 : vector<8x1xf32>
    %44 = math.exp %43 : vector<8x1xf32>
    %cst_33 = arith.constant 1.000000e+00 : f32
    %45 = vector.broadcast %cst_33 : f32 to vector<8x1xf32>
    %46 = arith.addf %45, %44 : vector<8x1xf32>
    %47 = tpu.reciprocal %46 {approx = true} : vector<8x1xf32> -> vector<8x1xf32>
    %c0_34 = arith.constant 0 : index
    %c0_35 = arith.constant 0 : index
    %48 = vector.load %arg13[%c0_34, %c0_35] : memref<8x1xf32, #tpu.memory_space<vmem>>, vector<8x1xf32>
    tpu.vector_store %arg13[%c0_34, %c0_35], %47 {strides = array<i32>} : memref<8x1xf32, #tpu.memory_space<vmem>>, vector<8x1xf32>,
    return
  }
  func.func @transform_0(%arg0: i32) -> (i32, i32) {
    %c0_i32 = arith.constant 0 : i32
    %c0_i32_0 = arith.constant 0 : i32
    return %arg0, %c0_i32 : i32, i32
  }
  func.func @transform_1(%arg0: i32) -> (i32, i32) {
    %c0_i32 = arith.constant 0 : i32
    %c0_i32_0 = arith.constant 0 : i32
    %c0_i32_1 = arith.constant 0 : i32
    return %c0_i32, %c0_i32_0 : i32, i32
  }
  func.func @transform_2(%arg0: i32) -> (i32, i32) {
    %c0_i32 = arith.constant 0 : i32
    %c0_i32_0 = arith.constant 0 : i32
    %c0_i32_1 = arith.constant 0 : i32
    return %c0_i32, %c0_i32_0 : i32, i32
  }
  func.func @transform_3(%arg0: i32) -> (i32, i32) {
    %c0_i32 = arith.constant 0 : i32
    %c0_i32_0 = arith.constant 0 : i32
    %c0_i32_1 = arith.constant 0 : i32
    return %c0_i32, %c0_i32_0 : i32, i32
  }
  func.func @transform_4(%arg0: i32) -> (i32, i32) {
    %c0_i32 = arith.constant 0 : i32
    %c0_i32_0 = arith.constant 0 : i32
    %c0_i32_1 = arith.constant 0 : i32
    return %c0_i32, %c0_i32_0 : i32, i32
  }
  func.func @transform_5(%arg0: i32) -> (i32, i32) {
    %c0_i32 = arith.constant 0 : i32
    %c0_i32_0 = arith.constant 0 : i32
    %c0_i32_1 = arith.constant 0 : i32
    return %c0_i32, %c0_i32_0 : i32, i32
  }
  func.func @transform_6(%arg0: i32) -> (i32, i32) {
    %c0_i32 = arith.constant 0 : i32
    %c0_i32_0 = arith.constant 0 : i32
    %c0_i32_1 = arith.constant 0 : i32
    return %c0_i32, %c0_i32_0 : i32, i32
  }
  func.func @transform_7(%arg0: i32) -> (i32, i32) {
    %c0_i32 = arith.constant 0 : i32
    %c0_i32_0 = arith.constant 0 : i32
    %c0_i32_1 = arith.constant 0 : i32
    return %c0_i32, %c0_i32_0 : i32, i32
  }
  func.func @transform_8(%arg0: i32) -> (i32, i32) {
    %c0_i32 = arith.constant 0 : i32
    %c0_i32_0 = arith.constant 0 : i32
    %c0_i32_1 = arith.constant 0 : i32
    return %c0_i32, %c0_i32_0 : i32, i32
  }
  func.func @transform_9(%arg0: i32) -> (i32, i32) {
    %c0_i32 = arith.constant 0 : i32
    %c0_i32_0 = arith.constant 0 : i32
    %c0_i32_1 = arith.constant 0 : i32
    return %c0_i32, %c0_i32_0 : i32, i32
  }
  func.func @transform_10(%arg0: i32) -> (i32, i32) {
    %c0_i32 = arith.constant 0 : i32
    %c0_i32_0 = arith.constant 0 : i32
    %c0_i32_1 = arith.constant 0 : i32
    return %c0_i32, %c0_i32_0 : i32, i32
  }
  func.func @transform_11(%arg0: i32) -> (i32, i32) {
    %c0_i32 = arith.constant 0 : i32
    %c0_i32_0 = arith.constant 0 : i32
    %c0_i32_1 = arith.constant 0 : i32
    return %c0_i32, %c0_i32_0 : i32, i32
  }
  func.func @transform_12(%arg0: i32) -> (i32, i32) {
    %c0_i32 = arith.constant 0 : i32
    %c0_i32_0 = arith.constant 0 : i32
    return %arg0, %c0_i32 : i32, i32
  }
}

</mosaic_0001>

<llo_original>
// kernel: fused_forward.1
$region0: #{fused_forward.1}
  #allocation0 [shape = 'u32[]', space=smem, size = 0x4, offset = 0x4, fixed_abs, tag = 'smem constant byte address 0x4 - core index']
  #allocation1 [shape = 'u32[144,128]{1,0:T(1,128)}', space=vmem, size = 0x12000, scoped, tag = 'internal scratch']
  #allocation2 [shape = 'f32[1,1]{1,0:T(1,128)S(1)}', space=vmem, size = 0x200, scoped, tag = 'scoped memory for fused_forward.1']
  %s0 = inlined_call_operand.vmem [shape: f32[8,8], index: 0, kind: input, shape index: {}]
  %s1 = inlined_call_operand.vmem [shape: bf16[8,1024], index: 1, kind: input, shape index: {}]
  %s2 = inlined_call_operand.hbm [shape: bf16[1024,256], index: 2, kind: input, shape index: {}]
  %s3 = inlined_call_operand.vmem [shape: f32[1,256], index: 3, kind: input, shape index: {}]
  %s4 = inlined_call_operand.vmem [shape: bf16[256,64], index: 4, kind: input, shape index: {}]
  %s5 = inlined_call_operand.vmem [shape: f32[1,64], index: 5, kind: input, shape index: {}]
  %s6 = inlined_call_operand.vmem [shape: bf16[64,16], index: 6, kind: input, shape index: {}]
  %s7 = inlined_call_operand.vmem [shape: f32[1,16], index: 7, kind: input, shape index: {}]
  %s8 = inlined_call_operand.vmem [shape: bf16[16,4], index: 8, kind: input, shape index: {}]
  %s9 = inlined_call_operand.vmem [shape: f32[1,4], index: 9, kind: input, shape index: {}]
  %s10 = inlined_call_operand.vmem [shape: bf16[4,1], index: 10, kind: input, shape index: {}]
  %s11 = inlined_call_operand.<no memory space> [shape: f32[1,1], index: 11, kind: input, shape index: {}]
  %s12 = inlined_call_operand.vmem [shape: f32[8,1], index: 12, kind: output, shape index: {}]
  %s13 = sld [smem:[#allocation0]]
  $region62: #{fused_forward.1} parent=0
    _
  %s15 = ssub.s32 1, %s13
  %s16 = scalar_select 0, %s15, %s13
  %v17 = vstv %s11
  %18 = vst [vmem:[#allocation2] sm:$0x1] %v17
  $region1: #{fused_forward.1} parent=0
    #allocation3 [shape = 'u8[524288]{0}', space=vmem, size = 0x80000, scoped, tag = 'input window, operand 2, single buffered']
    #allocation4 [shape = 's32[1]{0}', space=sflag, size = 0x4, scoped, tag = 'scoped memory for fused_forward.1']
    %19 = vsyncpa [#allocation4], 0
    // Predicated region
    $region2: #{fused_forward.1} parent=1 // pred_check
      _
    $region3: #{fused_forward.1} parent=1 // pred_check_branch
      %21 = sbr.rel (0) target = $region5
    $region4: #{fused_forward.1} parent=1 // pred_region
      _
    $region5: #{fused_forward.1} parent=1 // pred_fallthru
      _
    // Predicated region
    $region6: #{fused_forward.1} parent=1 // pred_check
      _
    $region7: #{fused_forward.1} parent=1 // pred_check_branch
      %23 = sbr.rel (0) target = $region9
    $region8: #{fused_forward.1} parent=1 // pred_region
      _
    $region9: #{fused_forward.1} parent=1 // pred_fallthru
      _
    // Predicated region
    $region10: #{fused_forward.1} parent=1 // pred_check
      _
    $region11: #{fused_forward.1} parent=1 // pred_check_branch
      %25 = sbr.rel (0) target = $region13
    $region12: #{fused_forward.1} parent=1 // pred_region
      %s27 = ssub.s32 16384, 16384
      %28 = vsyncadd [#allocation4], %s27
      %s29 = sshll.u32 [#allocation3], 4
      %s30 = int_to_ptr.vmem [resolvable:$true] %s29
      %35 = dma.hbm_to_vmem [thread:$0]  %s2, 16384, %s30, [#allocation4], 128, 128, 8
    $region13: #{fused_forward.1} parent=1 // pred_fallthru
      _
    // Predicated region
    $region14: #{fused_forward.1} parent=1 // pred_check
      _
    $region15: #{fused_forward.1} parent=1 // pred_check_branch
      %37 = sbr.rel (0) target = $region17
    $region16: #{fused_forward.1} parent=1 // pred_region
      _
    $region17: #{fused_forward.1} parent=1 // pred_fallthru
      _
    // Predicated region
    $region18: #{fused_forward.1} parent=1 // pred_check
      _
    $region19: #{fused_forward.1} parent=1 // pred_check_branch
      %39 = sbr.rel (0) target = $region21
    $region20: #{fused_forward.1} parent=1 // pred_region
      _
    $region21: #{fused_forward.1} parent=1 // pred_fallthru
      _
    // Predicated region
    $region22: #{fused_forward.1} parent=1 // pred_check
      _
    $region23: #{fused_forward.1} parent=1 // pred_check_branch
      %41 = sbr.rel (0) target = $region25
    $region24: #{fused_forward.1} parent=1 // pred_region
      _
    $region25: #{fused_forward.1} parent=1 // pred_fallthru
      _
    // Predicated region
    $region26: #{fused_forward.1} parent=1 // pred_check
      _
    $region27: #{fused_forward.1} parent=1 // pred_check_branch
      %43 = sbr.rel (0) target = $region29
    $region28: #{fused_forward.1} parent=1 // pred_region
      _
    $region29: #{fused_forward.1} parent=1 // pred_fallthru
      _
    // Predicated region
    $region30: #{fused_forward.1} parent=1 // pred_check
      _
    $region31: #{fused_forward.1} parent=1 // pred_check_branch
      %45 = sbr.rel (0) target = $region33
    $region32: #{fused_forward.1} parent=1 // pred_region
      _
    $region33: #{fused_forward.1} parent=1 // pred_fallthru
      _
    // Predicated region
    $region34: #{fused_forward.1} parent=1 // pred_check
      _
    $region35: #{fused_forward.1} parent=1 // pred_check_branch
      %47 = sbr.rel (0) target = $region37
    $region36: #{fused_forward.1} parent=1 // pred_region
      _
    $region37: #{fused_forward.1} parent=1 // pred_fallthru
      _
    // Predicated region
    $region38: #{fused_forward.1} parent=1 // pred_check
      _
    $region39: #{fused_forward.1} parent=1 // pred_check_branch
      %49 = sbr.rel (0) target = $region41
    $region40: #{fused_forward.1} parent=1 // pred_region
      _
    $region41: #{fused_forward.1} parent=1 // pred_fallthru
      _
    // Predicated region
    $region42: #{fused_forward.1} parent=1 // pred_check
      _
    $region43: #{fused_forward.1} parent=1 // pred_check_branch
      %51 = sbr.rel (0) target = $region45
    $region44: #{fused_forward.1} parent=1 // pred_region
      _
    $region45: #{fused_forward.1} parent=1 // pred_fallthru
      _
    // Predicated region
    $region46: #{fused_forward.1} parent=1 // pred_check
      _
    $region47: #{fused_forward.1} parent=1 // pred_check_branch
      %53 = sbr.rel (0) target = $region49
    $region48: #{fused_forward.1} parent=1 // pred_region
      _
    $region49: #{fused_forward.1} parent=1 // pred_fallthru
      _
    // Predicated region
    $region50: #{fused_forward.1} parent=1 // pred_check
      _
    $region51: #{fused_forward.1} parent=1 // pred_check_branch
      %55 = sbr.rel (0) target = $region53
    $region52: #{fused_forward.1} parent=1 // pred_region
      %56 = dma.done [#allocation4], 16384
    $region53: #{fused_forward.1} parent=1 // pred_fallthru
      _
    %v58 = vld [vmem:[%s0] sm:$0xff]
    %v59 = vpack.c.bf16 %v58, %v58
    %v60 = vld [vmem:[%s1] sm:$0xff]
    %v61 = vld [vmem:[%s1 + $0x8] sm:$0xff]
    %v62 = vld [vmem:[%s1 + $0x10] sm:$0xff]
    %v63 = vld [vmem:[%s1 + $0x18] sm:$0xff]
    %v68 = vunpack.c.l.b16 %v60
    %v69 = vunpack.c.h.b16 %v60
    %v70 = vunpack.c.l.b16 %v61
    %v71 = vunpack.c.h.b16 %v61
    %v72 = vunpack.c.l.b16 %v62
    %v73 = vunpack.c.h.b16 %v62
    %v74 = vunpack.c.l.b16 %v63
    %v75 = vunpack.c.h.b16 %v63
    %v76 = vpack.c.b16 %v68, %v68
    %v77 = vpack.c.b16 %v69, %v69
    %v78 = vpack.c.b16 %v70, %v70
    %v79 = vpack.c.b16 %v71, %v71
    %v80 = vpack.c.b16 %v72, %v72
    %v81 = vpack.c.b16 %v73, %v73
    %v82 = vpack.c.b16 %v74, %v74
    %v83 = vpack.c.b16 %v75, %v75
    %vm84 = vcmask 64512
    %v86 = vsel %vm84, %v59, 0
    %vm88 = vcmask 1043456
    %v90 = vsel %vm88, %v76, 0
    %v93 = vsel %vm88, %v77, 0
    %v96 = vsel %vm88, %v78, 0
    %v99 = vsel %vm88, %v79, 0
    %v102 = vsel %vm88, %v80, 0
    %v105 = vsel %vm88, %v81, 0
    %v108 = vsel %vm88, %v82, 0
    %v111 = vsel %vm88, %v83, 0
    %113 = vmatprep.subr.bf16.mxu0 %v93
    %114 = vmatpush1.bf16.msra.mxu0 %v90
    %115 = vmatprep.subr.bf16.mxu0 0
    %116 = vmatpush1.bf16.msra.mxu0 0
    %117 = vmatprep.subr.bf16.mxu0 0
    %118 = vmatpush1.bf16.msra.mxu0 0
    %119 = vmatprep.subr.bf16.mxu0 0
    %120 = vmatpush1.bf16.msra.mxu0 0
    %121 = vmatprep.subr.bf16.mxu0 0
    %122 = vmatpush1.bf16.msra.mxu0 0
    %123 = vmatprep.subr.bf16.mxu0 0
    %124 = vmatpush1.bf16.msra.mxu0 0
    %125 = vmatprep.subr.bf16.mxu0 0
    %126 = vmatpush1.bf16.msra.mxu0 0
    %127 = vmatprep.subr.bf16.mxu0 0
    %128 = vmatpush1.bf16.msra.mxu0 0
    %129 = vmatprep.subr.bf16.mxu0 0
    %130 = vmatpush1.bf16.msra.mxu0 0
    %131 = vmatprep.subr.bf16.mxu0 0
    %132 = vmatpush1.bf16.msra.mxu0 0
    %133 = vmatprep.subr.bf16.mxu0 0
    %134 = vmatpush1.bf16.msra.mxu0 0
    %135 = vmatprep.subr.bf16.mxu0 0
    %136 = vmatpush1.bf16.msra.mxu0 0
    %137 = vmatprep.subr.bf16.mxu0 0
    %138 = vmatpush1.bf16.msra.mxu0 0
    %139 = vmatprep.subr.bf16.mxu0 0
    %140 = vmatpush1.bf16.msra.mxu0 0
    %141 = vmatprep.subr.bf16.mxu0 0
    %142 = vmatpush1.bf16.msra.mxu0 0
    %143 = vmatprep.subr.bf16.mxu0 0
    %144 = vmatpush1.bf16.msra.mxu0 0
    %145 = vmatprep.mubr.bf16.mxu0 0
    %146 = vmatmul.mubr.bf16.gmra.mrb[0].mxu0 %v86
    %v147 = vpop.f32.mrb[0].mxu0
    %v148 = vadd.f32 0.0, %v147
    %v149 = vpop.f32.mrb[0].mxu0
    %v150 = vadd.f32 0.0, %v149
    %v151 = vpop.f32.mrb[0].mxu0
    %v152 = vpop.f32.mrb[0].mxu0
    %153 = vdwg.mxu0
    %154 = vmatprep.subr.bf16.mxu0 %v99
    %155 = vmatpush1.bf16.msra.mxu0 %v96
    %156 = vmatprep.subr.bf16.mxu0 0
    %157 = vmatpush1.bf16.msra.mxu0 0
    %158 = vmatprep.subr.bf16.mxu0 0
    %159 = vmatpush1.bf16.msra.mxu0 0
    %160 = vmatprep.subr.bf16.mxu0 0
    %161 = vmatpush1.bf16.msra.mxu0 0
    %162 = vmatprep.subr.bf16.mxu0 0
    %163 = vmatpush1.bf16.msra.mxu0 0
    %164 = vmatprep.subr.bf16.mxu0 0
    %165 = vmatpush1.bf16.msra.mxu0 0
    %166 = vmatprep.subr.bf16.mxu0 0
    %167 = vmatpush1.bf16.msra.mxu0 0
    %168 = vmatprep.subr.bf16.mxu0 0
    %169 = vmatpush1.bf16.msra.mxu0 0
    %170 = vmatprep.subr.bf16.mxu0 0
    %171 = vmatpush1.bf16.msra.mxu0 0
    %172 = vmatprep.subr.bf16.mxu0 0
    %173 = vmatpush1.bf16.msra.mxu0 0
    %174 = vmatprep.subr.bf16.mxu0 0
    %175 = vmatpush1.bf16.msra.mxu0 0
    %176 = vmatprep.subr.bf16.mxu0 0
    %177 = vmatpush1.bf16.msra.mxu0 0
    %178 = vmatprep.subr.bf16.mxu0 0
    %179 = vmatpush1.bf16.msra.mxu0 0
    %180 = vmatprep.subr.bf16.mxu0 0
    %181 = vmatpush1.bf16.msra.mxu0 0
    %182 = vmatprep.subr.bf16.mxu0 0
    %183 = vmatpush1.bf16.msra.mxu0 0
    %184 = vmatprep.subr.bf16.mxu0 0
    %185 = vmatpush1.bf16.msra.mxu0 0
    %186 = vmatprep.mubr.bf16.mxu0 0
    %187 = vmatmul.mubr.bf16.gmra.mrb[0].mxu0 %v86
    %v188 = vpop.f32.mrb[0].mxu0
    %v189 = vadd.f32 0.0, %v188
    %v190 = vpop.f32.mrb[0].mxu0
    %v191 = vadd.f32 0.0, %v190
    %v192 = vpop.f32.mrb[0].mxu0
    %v193 = vpop.f32.mrb[0].mxu0
    %194 = vdwg.mxu0
    %195 = vmatprep.subr.bf16.mxu0 %v105
    %196 = vmatpush1.bf16.msra.mxu0 %v102
    %197 = vmatprep.subr.bf16.mxu0 0
    %198 = vmatpush1.bf16.msra.mxu0 0
    %199 = vmatprep.subr.bf16.mxu0 0
    %200 = vmatpush1.bf16.msra.mxu0 0
    %201 = vmatprep.subr.bf16.mxu0 0
    %202 = vmatpush1.bf16.msra.mxu0 0
    %203 = vmatprep.subr.bf16.mxu0 0
    %204 = vmatpush1.bf16.msra.mxu0 0
    %205 = vmatprep.subr.bf16.mxu0 0
    %206 = vmatpush1.bf16.msra.mxu0 0
    %207 = vmatprep.subr.bf16.mxu0 0
    %208 = vmatpush1.bf16.msra.mxu0 0
    %209 = vmatprep.subr.bf16.mxu0 0
    %210 = vmatpush1.bf16.msra.mxu0 0
    %211 = vmatprep.subr.bf16.mxu0 0
    %212 = vmatpush1.bf16.msra.mxu0 0
    %213 = vmatprep.subr.bf16.mxu0 0
    %214 = vmatpush1.bf16.msra.mxu0 0
    %215 = vmatprep.subr.bf16.mxu0 0
    %216 = vmatpush1.bf16.msra.mxu0 0
    %217 = vmatprep.subr.bf16.mxu0 0
    %218 = vmatpush1.bf16.msra.mxu0 0
    %219 = vmatprep.subr.bf16.mxu0 0
    %220 = vmatpush1.bf16.msra.mxu0 0
    %221 = vmatprep.subr.bf16.mxu0 0
    %222 = vmatpush1.bf16.msra.mxu0 0
    %223 = vmatprep.subr.bf16.mxu0 0
    %224 = vmatpush1.bf16.msra.mxu0 0
    %225 = vmatprep.subr.bf16.mxu0 0
    %226 = vmatpush1.bf16.msra.mxu0 0
    %227 = vmatprep.mubr.bf16.mxu0 0
    %228 = vmatmul.mubr.bf16.gmra.mrb[0].mxu0 %v86
    %v229 = vpop.f32.mrb[0].mxu0
    %v230 = vadd.f32 0.0, %v229
    %v231 = vpop.f32.mrb[0].mxu0
    %v232 = vadd.f32 0.0, %v231
    %v233 = vpop.f32.mrb[0].mxu0
    %v234 = vpop.f32.mrb[0].mxu0
    %235 = vdwg.mxu0
    %236 = vmatprep.subr.bf16.mxu0 %v111
    %237 = vmatpush1.bf16.msra.mxu0 %v108
    %238 = vmatprep.subr.bf16.mxu0 0
    %239 = vmatpush1.bf16.msra.mxu0 0
    %240 = vmatprep.subr.bf16.mxu0 0
    %241 = vmatpush1.bf16.msra.mxu0 0
    %242 = vmatprep.subr.bf16.mxu0 0
    %243 = vmatpush1.bf16.msra.mxu0 0
    %244 = vmatprep.subr.bf16.mxu0 0
    %245 = vmatpush1.bf16.msra.mxu0 0
    %246 = vmatprep.subr.bf16.mxu0 0
    %247 = vmatpush1.bf16.msra.mxu0 0
    %248 = vmatprep.subr.bf16.mxu0 0
    %249 = vmatpush1.bf16.msra.mxu0 0
    %250 = vmatprep.subr.bf16.mxu0 0
    %251 = vmatpush1.bf16.msra.mxu0 0
    %252 = vmatprep.subr.bf16.mxu0 0
    %253 = vmatpush1.bf16.msra.mxu0 0
    %254 = vmatprep.subr.bf16.mxu0 0
    %255 = vmatpush1.bf16.msra.mxu0 0
    %256 = vmatprep.subr.bf16.mxu0 0
    %257 = vmatpush1.bf16.msra.mxu0 0
    %258 = vmatprep.subr.bf16.mxu0 0
    %259 = vmatpush1.bf16.msra.mxu0 0
    %260 = vmatprep.subr.bf16.mxu0 0
    %261 = vmatpush1.bf16.msra.mxu0 0
    %262 = vmatprep.subr.bf16.mxu0 0
    %263 = vmatpush1.bf16.msra.mxu0 0
    %264 = vmatprep.subr.bf16.mxu0 0
    %265 = vmatpush1.bf16.msra.mxu0 0
    %266 = vmatprep.subr.bf16.mxu0 0
    %267 = vmatpush1.bf16.msra.mxu0 0
    %268 = vmatprep.mubr.bf16.mxu0 0
    %269 = vmatmul.mubr.bf16.gmra.mrb[0].mxu0 %v86
    %v270 = vpop.f32.mrb[0].mxu0
    %v271 = vadd.f32 0.0, %v270
    %v272 = vpop.f32.mrb[0].mxu0
    %v273 = vadd.f32 0.0, %v272
    %v274 = vpop.f32.mrb[0].mxu0
    %v275 = vpop.f32.mrb[0].mxu0
    %276 = vdwg.mxu0
    %v277 = vpack.c.bf16 %v148, %v148
    %v278 = vpack.c.bf16 %v150, %v150
    %v279 = vpack.c.bf16 %v189, %v189
    %v280 = vpack.c.bf16 %v191, %v191
    %v281 = vpack.c.bf16 %v230, %v230
    %v282 = vpack.c.bf16 %v232, %v232
    %v283 = vpack.c.bf16 %v271, %v271
    %v284 = vpack.c.bf16 %v273, %v273
    %v285 = vld [vmem:[#allocation3] sm:$0xff]
    %v286 = vld [vmem:[#allocation3 + $0x8] sm:$0xff]
    %v287 = vld [vmem:[#allocation3 + $0x10] sm:$0xff]
    %v288 = vld [vmem:[#allocation3 + $0x18] sm:$0xff]
    %v289 = vld [vmem:[#allocation3 + $0x20] sm:$0xff]
    %v290 = vld [vmem:[#allocation3 + $0x28] sm:$0xff]
    %v291 = vld [vmem:[#allocation3 + $0x30] sm:$0xff]
    %v292 = vld [vmem:[#allocation3 + $0x38] sm:$0xff]
    %v293 = vld [vmem:[#allocation3 + $0x40] sm:$0xff]
    %v294 = vld [vmem:[#allocation3 + $0x48] sm:$0xff]
    %v295 = vld [vmem:[#allocation3 + $0x50] sm:$0xff]
    %v296 = vld [vmem:[#allocation3 + $0x58] sm:$0xff]
    %v297 = vld [vmem:[#allocation3 + $0x60] sm:$0xff]
    %v298 = vld [vmem:[#allocation3 + $0x68] sm:$0xff]
    %v299 = vld [vmem:[#allocation3 + $0x70] sm:$0xff]
    %v300 = vld [vmem:[#allocation3 + $0x78] sm:$0xff]
    %v301 = vld [vmem:[#allocation3 + $0x80] sm:$0xff]
    %v302 = vld [vmem:[#allocation3 + $0x88] sm:$0xff]
    %v303 = vld [vmem:[#allocation3 + $0x90] sm:$0xff]
    %v304 = vld [vmem:[#allocation3 + $0x98] sm:$0xff]
    %v305 = vld [vmem:[#allocation3 + $0xa0] sm:$0xff]
    %v306 = vld [vmem:[#allocation3 + $0xa8] sm:$0xff]
    %v307 = vld [vmem:[#allocation3 + $0xb0] sm:$0xff]
    %v308 = vld [vmem:[#allocation3 + $0xb8] sm:$0xff]
    %v309 = vld [vmem:[#allocation3 + $0xc0] sm:$0xff]
    %v310 = vld [vmem:[#allocation3 + $0xc8] sm:$0xff]
    %v311 = vld [vmem:[#allocation3 + $0xd0] sm:$0xff]
    %v312 = vld [vmem:[#allocation3 + $0xd8] sm:$0xff]
    %v313 = vld [vmem:[#allocation3 + $0xe0] sm:$0xff]
    %v314 = vld [vmem:[#allocation3 + $0xe8] sm:$0xff]
    %v315 = vld [vmem:[#allocation3 + $0xf0] sm:$0xff]
    %v316 = vld [vmem:[#allocation3 + $0xf8] sm:$0xff]
    %v317 = vld [vmem:[#allocation3 + $0x100] sm:$0xff]
    %v318 = vld [vmem:[#allocation3 + $0x108] sm:$0xff]
    %v319 = vld [vmem:[#allocation3 + $0x110] sm:$0xff]
    %v320 = vld [vmem:[#allocation3 + $0x118] sm:$0xff]
    %v321 = vld [vmem:[#allocation3 + $0x120] sm:$0xff]
    %v322 = vld [vmem:[#allocation3 + $0x128] sm:$0xff]
    %v323 = vld [vmem:[#allocation3 + $0x130] sm:$0xff]
    %v324 = vld [vmem:[#allocation3 + $0x138] sm:$0xff]
    %v325 = vld [vmem:[#allocation3 + $0x140] sm:$0xff]
    %v326 = vld [vmem:[#allocation3 + $0x148] sm:$0xff]
    %v327 = vld [vmem:[#allocation3 + $0x150] sm:$0xff]
    %v328 = vld [vmem:[#allocation3 + $0x158] sm:$0xff]
    %v329 = vld [vmem:[#allocation3 + $0x160] sm:$0xff]
    %v330 = vld [vmem:[#allocation3 + $0x168] sm:$0xff]
    %v331 = vld [vmem:[#allocation3 + $0x170] sm:$0xff]
    %v332 = vld [vmem:[#allocation3 + $0x178] sm:$0xff]
    %v333 = vld [vmem:[#allocation3 + $0x180] sm:$0xff]
    %v334 = vld [vmem:[#allocation3 + $0x188] sm:$0xff]
    %v335 = vld [vmem:[#allocation3 + $0x190] sm:$0xff]
    %v336 = vld [vmem:[#allocation3 + $0x198] sm:$0xff]
    %v337 = vld [vmem:[#allocation3 + $0x1a0] sm:$0xff]
    %v338 = vld [vmem:[#allocation3 + $0x1a8] sm:$0xff]
    %v339 = vld [vmem:[#allocation3 + $0x1b0] sm:$0xff]
    %v340 = vld [vmem:[#allocation3 + $0x1b8] sm:$0xff]
    %v341 = vld [vmem:[#allocation3 + $0x1c0] sm:$0xff]
    %v342 = vld [vmem:[#allocation3 + $0x1c8] sm:$0xff]
    %v343 = vld [vmem:[#allocation3 + $0x1d0] sm:$0xff]
    %v344 = vld [vmem:[#allocation3 + $0x1d8] sm:$0xff]
    %v345 = vld [vmem:[#allocation3 + $0x1e0] sm:$0xff]
    %v346 = vld [vmem:[#allocation3 + $0x1e8] sm:$0xff]
    %v347 = vld [vmem:[#allocation3 + $0x1f0] sm:$0xff]
    %v348 = vld [vmem:[#allocation3 + $0x1f8] sm:$0xff]
    %v349 = vld [vmem:[#allocation3 + $0x200] sm:$0xff]
    %v350 = vld [vmem:[#allocation3 + $0x208] sm:$0xff]
    %v351 = vld [vmem:[#allocation3 + $0x210] sm:$0xff]
    %v352 = vld [vmem:[#allocation3 + $0x218] sm:$0xff]
    %v353 = vld [vmem:[#allocation3 + $0x220] sm:$0xff]
    %v354 = vld [vmem:[#allocation3 + $0x228] sm:$0xff]
    %v355 = vld [vmem:[#allocation3 + $0x230] sm:$0xff]
    %v356 = vld [vmem:[#allocation3 + $0x238] sm:$0xff]
    %v357 = vld [vmem:[#allocation3 + $0x240] sm:$0xff]
    %v358 = vld [vmem:[#allocation3 + $0x248] sm:$0xff]
    %v359 = vld [vmem:[#allocation3 + $0x250] sm:$0xff]
    %v360 = vld [vmem:[#allocation3 + $0x258] sm:$0xff]
    %v361 = vld [vmem:[#allocation3 + $0x260] sm:$0xff]
    %v362 = vld [vmem:[#allocation3 + $0x268] sm:$0xff]
    %v363 = vld [vmem:[#allocation3 + $0x270] sm:$0xff]
    %v364 = vld [vmem:[#allocation3 + $0x278] sm:$0xff]
    %v365 = vld [vmem:[#allocation3 + $0x280] sm:$0xff]
    %v366 = vld [vmem:[#allocation3 + $0x288] sm:$0xff]
    %v367 = vld [vmem:[#allocation3 + $0x290] sm:$0xff]
    %v368 = vld [vmem:[#allocation3 + $0x298] sm:$0xff]
    %v369 = vld [vmem:[#allocation3 + $0x2a0] sm:$0xff]
    %v370 = vld [vmem:[#allocation3 + $0x2a8] sm:$0xff]
    %v371 = vld [vmem:[#allocation3 + $0x2b0] sm:$0xff]
    %v372 = vld [vmem:[#allocation3 + $0x2b8] sm:$0xff]
    %v373 = vld [vmem:[#allocation3 + $0x2c0] sm:$0xff]
    %v374 = vld [vmem:[#allocation3 + $0x2c8] sm:$0xff]
    %v375 = vld [vmem:[#allocation3 + $0x2d0] sm:$0xff]
    %v376 = vld [vmem:[#allocation3 + $0x2d8] sm:$0xff]
    %v377 = vld [vmem:[#allocation3 + $0x2e0] sm:$0xff]
    %v378 = vld [vmem:[#allocation3 + $0x2e8] sm:$0xff]
    %v379 = vld [vmem:[#allocation3 + $0x2f0] sm:$0xff]
    %v380 = vld [vmem:[#allocation3 + $0x2f8] sm:$0xff]
    %v381 = vld [vmem:[#allocation3 + $0x300] sm:$0xff]
    %v382 = vld [vmem:[#allocation3 + $0x308] sm:$0xff]
    %v383 = vld [vmem:[#allocation3 + $0x310] sm:$0xff]
    %v384 = vld [vmem:[#allocation3 + $0x318] sm:$0xff]
    %v385 = vld [vmem:[#allocation3 + $0x320] sm:$0xff]
    %v386 = vld [vmem:[#allocation3 + $0x328] sm:$0xff]
    %v387 = vld [vmem:[#allocation3 + $0x330] sm:$0xff]
    %v388 = vld [vmem:[#allocation3 + $0x338] sm:$0xff]
    %v389 = vld [vmem:[#allocation3 + $0x340] sm:$0xff]
    %v390 = vld [vmem:[#allocation3 + $0x348] sm:$0xff]
    %v391 = vld [vmem:[#allocation3 + $0x350] sm:$0xff]
    %v392 = vld [vmem:[#allocation3 + $0x358] sm:$0xff]
    %v393 = vld [vmem:[#allocation3 + $0x360] sm:$0xff]
    %v394 = vld [vmem:[#allocation3 + $0x368] sm:$0xff]
    %v395 = vld [vmem:[#allocation3 + $0x370] sm:$0xff]
    %v396 = vld [vmem:[#allocation3 + $0x378] sm:$0xff]
    %v397 = vld [vmem:[#allocation3 + $0x380] sm:$0xff]
    %v398 = vld [vmem:[#allocation3 + $0x388] sm:$0xff]
    %v399 = vld [vmem:[#allocation3 + $0x390] sm:$0xff]
    %v400 = vld [vmem:[#allocation3 + $0x398] sm:$0xff]
    %v401 = vld [vmem:[#allocation3 + $0x3a0] sm:$0xff]
    %v402 = vld [vmem:[#allocation3 + $0x3a8] sm:$0xff]
    %v403 = vld [vmem:[#allocation3 + $0x3b0] sm:$0xff]
    %v404 = vld [vmem:[#allocation3 + $0x3b8] sm:$0xff]
    %v405 = vld [vmem:[#allocation3 + $0x3c0] sm:$0xff]
    %v406 = vld [vmem:[#allocation3 + $0x3c8] sm:$0xff]
    %v407 = vld [vmem:[#allocation3 + $0x3d0] sm:$0xff]
    %v408 = vld [vmem:[#allocation3 + $0x3d8] sm:$0xff]
    %v409 = vld [vmem:[#allocation3 + $0x3e0] sm:$0xff]
    %v410 = vld [vmem:[#allocation3 + $0x3e8] sm:$0xff]
    %v411 = vld [vmem:[#allocation3 + $0x3f0] sm:$0xff]
    %v412 = vld [vmem:[#allocation3 + $0x3f8] sm:$0xff]
    %v413 = vld [vmem:[%s3] sm:$0x3]
    %v415 = vlaneseq
    %v416 = vshrl.u32 %v415, 7
    %v417 = vsub.s32 0, %v416
    %v418 = vrot.slane %v413, %v417
    %v419 = vlaneseq
    %v420 = vshrl.u32 %v419, 7
    %v421 = vsub.s32 1, %v420
    %v422 = vrot.slane %v413, %v421
    %v553 = vunpack.c.l.b16 %v285
    %v554 = vunpack.c.h.b16 %v285
    %v555 = vunpack.c.l.b16 %v286
    %v556 = vunpack.c.h.b16 %v286
    %v557 = vunpack.c.l.b16 %v287
    %v558 = vunpack.c.h.b16 %v287
    %v559 = vunpack.c.l.b16 %v288
    %v560 = vunpack.c.h.b16 %v288
    %v561 = vunpack.c.l.b16 %v289
    %v562 = vunpack.c.h.b16 %v289
    %v563 = vunpack.c.l.b16 %v290
    %v564 = vunpack.c.h.b16 %v290
    %v565 = vunpack.c.l.b16 %v291
    %v566 = vunpack.c.h.b16 %v291
    %v567 = vunpack.c.l.b16 %v292
    %v568 = vunpack.c.h.b16 %v292
    %v569 = vunpack.c.l.b16 %v293
    %v570 = vunpack.c.h.b16 %v293
    %v571 = vunpack.c.l.b16 %v294
    %v572 = vunpack.c.h.b16 %v294
    %v573 = vunpack.c.l.b16 %v295
    %v574 = vunpack.c.h.b16 %v295
    %v575 = vunpack.c.l.b16 %v296
    %v576 = vunpack.c.h.b16 %v296
    %v577 = vunpack.c.l.b16 %v297
    %v578 = vunpack.c.h.b16 %v297
    %v579 = vunpack.c.l.b16 %v298
    %v580 = vunpack.c.h.b16 %v298
    %v581 = vunpack.c.l.b16 %v299
    %v582 = vunpack.c.h.b16 %v299
    %v583 = vunpack.c.l.b16 %v300
    %v584 = vunpack.c.h.b16 %v300
    %v585 = vunpack.c.l.b16 %v301
    %v586 = vunpack.c.h.b16 %v301
    %v587 = vunpack.c.l.b16 %v302
    %v588 = vunpack.c.h.b16 %v302
    %v589 = vunpack.c.l.b16 %v303
    %v590 = vunpack.c.h.b16 %v303
    %v591 = vunpack.c.l.b16 %v304
    %v592 = vunpack.c.h.b16 %v304
    %v593 = vunpack.c.l.b16 %v305
    %v594 = vunpack.c.h.b16 %v305
    %v595 = vunpack.c.l.b16 %v306
    %v596 = vunpack.c.h.b16 %v306
    %v597 = vunpack.c.l.b16 %v307
    %v598 = vunpack.c.h.b16 %v307
    %v599 = vunpack.c.l.b16 %v308
    %v600 = vunpack.c.h.b16 %v308
    %v601 = vunpack.c.l.b16 %v309
    %v602 = vunpack.c.h.b16 %v309
    %v603 = vunpack.c.l.b16 %v310
    %v604 = vunpack.c.h.b16 %v310
    %v605 = vunpack.c.l.b16 %v311
    %v606 = vunpack.c.h.b16 %v311
    %v607 = vunpack.c.l.b16 %v312
    %v608 = vunpack.c.h.b16 %v312
    %v609 = vunpack.c.l.b16 %v313
    %v610 = vunpack.c.h.b16 %v313
    %v611 = vunpack.c.l.b16 %v314
    %v612 = vunpack.c.h.b16 %v314
    %v613 = vunpack.c.l.b16 %v315
    %v614 = vunpack.c.h.b16 %v315
    %v615 = vunpack.c.l.b16 %v316
    %v616 = vunpack.c.h.b16 %v316
    %v617 = vunpack.c.l.b16 %v317
    %v618 = vunpack.c.h.b16 %v317
    %v619 = vunpack.c.l.b16 %v318
    %v620 = vunpack.c.h.b16 %v318
    %v621 = vunpack.c.l.b16 %v319
    %v622 = vunpack.c.h.b16 %v319
    %v623 = vunpack.c.l.b16 %v320
    %v624 = vunpack.c.h.b16 %v320
    %v625 = vunpack.c.l.b16 %v321
    %v626 = vunpack.c.h.b16 %v321
    %v627 = vunpack.c.l.b16 %v322
    %v628 = vunpack.c.h.b16 %v322
    %v629 = vunpack.c.l.b16 %v323
    %v630 = vunpack.c.h.b16 %v323
    %v631 = vunpack.c.l.b16 %v324
    %v632 = vunpack.c.h.b16 %v324
    %v633 = vunpack.c.l.b16 %v325
    %v634 = vunpack.c.h.b16 %v325
    %v635 = vunpack.c.l.b16 %v326
    %v636 = vunpack.c.h.b16 %v326
    %v637 = vunpack.c.l.b16 %v327
    %v638 = vunpack.c.h.b16 %v327
    %v639 = vunpack.c.l.b16 %v328
    %v640 = vunpack.c.h.b16 %v328
    %v641 = vunpack.c.l.b16 %v329
    %v642 = vunpack.c.h.b16 %v329
    %v643 = vunpack.c.l.b16 %v330
    %v644 = vunpack.c.h.b16 %v330
    %v645 = vunpack.c.l.b16 %v331
    %v646 = vunpack.c.h.b16 %v331
    %v647 = vunpack.c.l.b16 %v332
    %v648 = vunpack.c.h.b16 %v332
    %v649 = vunpack.c.l.b16 %v333
    %v650 = vunpack.c.h.b16 %v333
    %v651 = vunpack.c.l.b16 %v334
    %v652 = vunpack.c.h.b16 %v334
    %v653 = vunpack.c.l.b16 %v335
    %v654 = vunpack.c.h.b16 %v335
    %v655 = vunpack.c.l.b16 %v336
    %v656 = vunpack.c.h.b16 %v336
    %v657 = vunpack.c.l.b16 %v337
    %v658 = vunpack.c.h.b16 %v337
    %v659 = vunpack.c.l.b16 %v338
    %v660 = vunpack.c.h.b16 %v338
    %v661 = vunpack.c.l.b16 %v339
    %v662 = vunpack.c.h.b16 %v339
    %v663 = vunpack.c.l.b16 %v340
    %v664 = vunpack.c.h.b16 %v340
    %v665 = vunpack.c.l.b16 %v341
    %v666 = vunpack.c.h.b16 %v341
    %v667 = vunpack.c.l.b16 %v342
    %v668 = vunpack.c.h.b16 %v342
    %v669 = vunpack.c.l.b16 %v343
    %v670 = vunpack.c.h.b16 %v343
    %v671 = vunpack.c.l.b16 %v344
    %v672 = vunpack.c.h.b16 %v344
    %v673 = vunpack.c.l.b16 %v345
    %v674 = vunpack.c.h.b16 %v345
    %v675 = vunpack.c.l.b16 %v346
    %v676 = vunpack.c.h.b16 %v346
    %v677 = vunpack.c.l.b16 %v347
    %v678 = vunpack.c.h.b16 %v347
    %v679 = vunpack.c.l.b16 %v348
    %v680 = vunpack.c.h.b16 %v348
    %v681 = vunpack.c.l.b16 %v349
    %v682 = vunpack.c.h.b16 %v349
    %v683 = vunpack.c.l.b16 %v350
    %v684 = vunpack.c.h.b16 %v350
    %v685 = vunpack.c.l.b16 %v351
    %v686 = vunpack.c.h.b16 %v351
    %v687 = vunpack.c.l.b16 %v352
    %v688 = vunpack.c.h.b16 %v352
    %v689 = vunpack.c.l.b16 %v353
    %v690 = vunpack.c.h.b16 %v353
    %v691 = vunpack.c.l.b16 %v354
    %v692 = vunpack.c.h.b16 %v354
    %v693 = vunpack.c.l.b16 %v355
    %v694 = vunpack.c.h.b16 %v355
    %v695 = vunpack.c.l.b16 %v356
    %v696 = vunpack.c.h.b16 %v356
    %v697 = vunpack.c.l.b16 %v357
    %v698 = vunpack.c.h.b16 %v357
    %v699 = vunpack.c.l.b16 %v358
    %v700 = vunpack.c.h.b16 %v358
    %v701 = vunpack.c.l.b16 %v359
    %v702 = vunpack.c.h.b16 %v359
    %v703 = vunpack.c.l.b16 %v360
    %v704 = vunpack.c.h.b16 %v360
    %v705 = vunpack.c.l.b16 %v361
    %v706 = vunpack.c.h.b16 %v361
    %v707 = vunpack.c.l.b16 %v362
    %v708 = vunpack.c.h.b16 %v362
    %v709 = vunpack.c.l.b16 %v363
    %v710 = vunpack.c.h.b16 %v363
    %v711 = vunpack.c.l.b16 %v364
    %v712 = vunpack.c.h.b16 %v364
    %v713 = vunpack.c.l.b16 %v365
    %v714 = vunpack.c.h.b16 %v365
    %v715 = vunpack.c.l.b16 %v366
    %v716 = vunpack.c.h.b16 %v366
    %v717 = vunpack.c.l.b16 %v367
    %v718 = vunpack.c.h.b16 %v367
    %v719 = vunpack.c.l.b16 %v368
    %v720 = vunpack.c.h.b16 %v368
    %v721 = vunpack.c.l.b16 %v369
    %v722 = vunpack.c.h.b16 %v369
    %v723 = vunpack.c.l.b16 %v370
    %v724 = vunpack.c.h.b16 %v370
    %v725 = vunpack.c.l.b16 %v371
    %v726 = vunpack.c.h.b16 %v371
    %v727 = vunpack.c.l.b16 %v372
    %v728 = vunpack.c.h.b16 %v372
    %v729 = vunpack.c.l.b16 %v373
    %v730 = vunpack.c.h.b16 %v373
    %v731 = vunpack.c.l.b16 %v374
    %v732 = vunpack.c.h.b16 %v374
    %v733 = vunpack.c.l.b16 %v375
    %v734 = vunpack.c.h.b16 %v375
    %v735 = vunpack.c.l.b16 %v376
    %v736 = vunpack.c.h.b16 %v376
    %v737 = vunpack.c.l.b16 %v377
    %v738 = vunpack.c.h.b16 %v377
    %v739 = vunpack.c.l.b16 %v378
    %v740 = vunpack.c.h.b16 %v378
    %v741 = vunpack.c.l.b16 %v379
    %v742 = vunpack.c.h.b16 %v379
    %v743 = vunpack.c.l.b16 %v380
    %v744 = vunpack.c.h.b16 %v380
    %v745 = vunpack.c.l.b16 %v381
    %v746 = vunpack.c.h.b16 %v381
    %v747 = vunpack.c.l.b16 %v382
    %v748 = vunpack.c.h.b16 %v382
    %v749 = vunpack.c.l.b16 %v383
    %v750 = vunpack.c.h.b16 %v383
    %v751 = vunpack.c.l.b16 %v384
    %v752 = vunpack.c.h.b16 %v384
    %v753 = vunpack.c.l.b16 %v385
    %v754 = vunpack.c.h.b16 %v385
    %v755 = vunpack.c.l.b16 %v386
    %v756 = vunpack.c.h.b16 %v386
    %v757 = vunpack.c.l.b16 %v387
    %v758 = vunpack.c.h.b16 %v387
    %v759 = vunpack.c.l.b16 %v388
    %v760 = vunpack.c.h.b16 %v388
    %v761 = vunpack.c.l.b16 %v389
    %v762 = vunpack.c.h.b16 %v389
    %v763 = vunpack.c.l.b16 %v390
    %v764 = vunpack.c.h.b16 %v390
    %v765 = vunpack.c.l.b16 %v391
    %v766 = vunpack.c.h.b16 %v391
    %v767 = vunpack.c.l.b16 %v392
    %v768 = vunpack.c.h.b16 %v392
    %v769 = vunpack.c.l.b16 %v393
    %v770 = vunpack.c.h.b16 %v393
    %v771 = vunpack.c.l.b16 %v394
    %v772 = vunpack.c.h.b16 %v394
    %v773 = vunpack.c.l.b16 %v395
    %v774 = vunpack.c.h.b16 %v395
    %v775 = vunpack.c.l.b16 %v396
    %v776 = vunpack.c.h.b16 %v396
    %v777 = vunpack.c.l.b16 %v397
    %v778 = vunpack.c.h.b16 %v397
    %v779 = vunpack.c.l.b16 %v398
    %v780 = vunpack.c.h.b16 %v398
    %v781 = vunpack.c.l.b16 %v399
    %v782 = vunpack.c.h.b16 %v399
    %v783 = vunpack.c.l.b16 %v400
    %v784 = vunpack.c.h.b16 %v400
    %v785 = vunpack.c.l.b16 %v401
    %v786 = vunpack.c.h.b16 %v401
    %v787 = vunpack.c.l.b16 %v402
    %v788 = vunpack.c.h.b16 %v402
    %v789 = vunpack.c.l.b16 %v403
    %v790 = vunpack.c.h.b16 %v403
    %v791 = vunpack.c.l.b16 %v404
    %v792 = vunpack.c.h.b16 %v404
    %v793 = vunpack.c.l.b16 %v405
    %v794 = vunpack.c.h.b16 %v405
    %v795 = vunpack.c.l.b16 %v406
    %v796 = vunpack.c.h.b16 %v406
    %v797 = vunpack.c.l.b16 %v407
    %v798 = vunpack.c.h.b16 %v407
    %v799 = vunpack.c.l.b16 %v408
    %v800 = vunpack.c.h.b16 %v408
    %v801 = vunpack.c.l.b16 %v409
    %v802 = vunpack.c.h.b16 %v409
    %v803 = vunpack.c.l.b16 %v410
    %v804 = vunpack.c.h.b16 %v410
    %v805 = vunpack.c.l.b16 %v411
    %v806 = vunpack.c.h.b16 %v411
    %v807 = vunpack.c.l.b16 %v412
    %v808 = vunpack.c.h.b16 %v412
    %v809 = vpack.c.b16 %v555, %v553
    %v810 = vpack.c.b16 %v556, %v554
    %v811 = vpack.c.b16 %v559, %v557
    %v812 = vpack.c.b16 %v560, %v558
    %v813 = vpack.c.b16 %v563, %v561
    %v814 = vpack.c.b16 %v564, %v562
    %v815 = vpack.c.b16 %v567, %v565
    %v816 = vpack.c.b16 %v568, %v566
    %v817 = vpack.c.b16 %v571, %v569
    %v818 = vpack.c.b16 %v572, %v570
    %v819 = vpack.c.b16 %v575, %v573
    %v820 = vpack.c.b16 %v576, %v574
    %v821 = vpack.c.b16 %v579, %v577
    %v822 = vpack.c.b16 %v580, %v578
    %v823 = vpack.c.b16 %v583, %v581
    %v824 = vpack.c.b16 %v584, %v582
    %v825 = vpack.c.b16 %v587, %v585
    %v826 = vpack.c.b16 %v588, %v586
    %v827 = vpack.c.b16 %v591, %v589
    %v828 = vpack.c.b16 %v592, %v590
    %v829 = vpack.c.b16 %v595, %v593
    %v830 = vpack.c.b16 %v596, %v594
    %v831 = vpack.c.b16 %v599, %v597
    %v832 = vpack.c.b16 %v600, %v598
    %v833 = vpack.c.b16 %v603, %v601
    %v834 = vpack.c.b16 %v604, %v602
    %v835 = vpack.c.b16 %v607, %v605
    %v836 = vpack.c.b16 %v608, %v606
    %v837 = vpack.c.b16 %v611, %v609
    %v838 = vpack.c.b16 %v612, %v610
    %v839 = vpack.c.b16 %v615, %v613
    %v840 = vpack.c.b16 %v616, %v614
    %v841 = vpack.c.b16 %v619, %v617
    %v842 = vpack.c.b16 %v620, %v618
    %v843 = vpack.c.b16 %v623, %v621
    %v844 = vpack.c.b16 %v624, %v622
    %v845 = vpack.c.b16 %v627, %v625
    %v846 = vpack.c.b16 %v628, %v626
    %v847 = vpack.c.b16 %v631, %v629
    %v848 = vpack.c.b16 %v632, %v630
    %v849 = vpack.c.b16 %v635, %v633
    %v850 = vpack.c.b16 %v636, %v634
    %v851 = vpack.c.b16 %v639, %v637
    %v852 = vpack.c.b16 %v640, %v638
    %v853 = vpack.c.b16 %v643, %v641
    %v854 = vpack.c.b16 %v644, %v642
    %v855 = vpack.c.b16 %v647, %v645
    %v856 = vpack.c.b16 %v648, %v646
    %v857 = vpack.c.b16 %v651, %v649
    %v858 = vpack.c.b16 %v652, %v650
    %v859 = vpack.c.b16 %v655, %v653
    %v860 = vpack.c.b16 %v656, %v654
    %v861 = vpack.c.b16 %v659, %v657
    %v862 = vpack.c.b16 %v660, %v658
    %v863 = vpack.c.b16 %v663, %v661
    %v864 = vpack.c.b16 %v664, %v662
    %v865 = vpack.c.b16 %v667, %v665
    %v866 = vpack.c.b16 %v668, %v666
    %v867 = vpack.c.b16 %v671, %v669
    %v868 = vpack.c.b16 %v672, %v670
    %v869 = vpack.c.b16 %v675, %v673
    %v870 = vpack.c.b16 %v676, %v674
    %v871 = vpack.c.b16 %v679, %v677
    %v872 = vpack.c.b16 %v680, %v678
    %v873 = vpack.c.b16 %v683, %v681
    %v874 = vpack.c.b16 %v684, %v682
    %v875 = vpack.c.b16 %v687, %v685
    %v876 = vpack.c.b16 %v688, %v686
    %v877 = vpack.c.b16 %v691, %v689
    %v878 = vpack.c.b16 %v692, %v690
    %v879 = vpack.c.b16 %v695, %v693
    %v880 = vpack.c.b16 %v696, %v694
    %v881 = vpack.c.b16 %v699, %v697
    %v882 = vpack.c.b16 %v700, %v698
    %v883 = vpack.c.b16 %v703, %v701
    %v884 = vpack.c.b16 %v704, %v702
    %v885 = vpack.c.b16 %v707, %v705
    %v886 = vpack.c.b16 %v708, %v706
    %v887 = vpack.c.b16 %v711, %v709
    %v888 = vpack.c.b16 %v712, %v710
    %v889 = vpack.c.b16 %v715, %v713
    %v890 = vpack.c.b16 %v716, %v714
    %v891 = vpack.c.b16 %v719, %v717
    %v892 = vpack.c.b16 %v720, %v718
    %v893 = vpack.c.b16 %v723, %v721
    %v894 = vpack.c.b16 %v724, %v722
    %v895 = vpack.c.b16 %v727, %v725
    %v896 = vpack.c.b16 %v728, %v726
    %v897 = vpack.c.b16 %v731, %v729
    %v898 = vpack.c.b16 %v732, %v730
    %v899 = vpack.c.b16 %v735, %v733
    %v900 = vpack.c.b16 %v736, %v734
    %v901 = vpack.c.b16 %v739, %v737
    %v902 = vpack.c.b16 %v740, %v738
    %v903 = vpack.c.b16 %v743, %v741
    %v904 = vpack.c.b16 %v744, %v742
    %v905 = vpack.c.b16 %v747, %v745
    %v906 = vpack.c.b16 %v748, %v746
    %v907 = vpack.c.b16 %v751, %v749
    %v908 = vpack.c.b16 %v752, %v750
    %v909 = vpack.c.b16 %v755, %v753
    %v910 = vpack.c.b16 %v756, %v754
    %v911 = vpack.c.b16 %v759, %v757
    %v912 = vpack.c.b16 %v760, %v758
    %v913 = vpack.c.b16 %v763, %v761
    %v914 = vpack.c.b16 %v764, %v762
    %v915 = vpack.c.b16 %v767, %v765
    %v916 = vpack.c.b16 %v768, %v766
    %v917 = vpack.c.b16 %v771, %v769
    %v918 = vpack.c.b16 %v772, %v770
    %v919 = vpack.c.b16 %v775, %v773
    %v920 = vpack.c.b16 %v776, %v774
    %v921 = vpack.c.b16 %v779, %v777
    %v922 = vpack.c.b16 %v780, %v778
    %v923 = vpack.c.b16 %v783, %v781
    %v924 = vpack.c.b16 %v784, %v782
    %v925 = vpack.c.b16 %v787, %v785
    %v926 = vpack.c.b16 %v788, %v786
    %v927 = vpack.c.b16 %v791, %v789
    %v928 = vpack.c.b16 %v792, %v790
    %v929 = vpack.c.b16 %v795, %v793
    %v930 = vpack.c.b16 %v796, %v794
    %v931 = vpack.c.b16 %v799, %v797
    %v932 = vpack.c.b16 %v800, %v798
    %v933 = vpack.c.b16 %v803, %v801
    %v934 = vpack.c.b16 %v804, %v802
    %v935 = vpack.c.b16 %v807, %v805
    %v936 = vpack.c.b16 %v808, %v806
    %1065 = vmatprep.subr.bf16.mxu0 %v810
    %1066 = vmatpush1.bf16.msra.mxu0 %v809
    %1067 = vmatprep.subr.bf16.mxu0 %v812
    %1068 = vmatpush1.bf16.msra.mxu0 %v811
    %1069 = vmatprep.subr.bf16.mxu0 %v814
    %1070 = vmatpush1.bf16.msra.mxu0 %v813
    %1071 = vmatprep.subr.bf16.mxu0 %v816
    %1072 = vmatpush1.bf16.msra.mxu0 %v815
    %1073 = vmatprep.subr.bf16.mxu0 %v818
    %1074 = vmatpush1.bf16.msra.mxu0 %v817
    %1075 = vmatprep.subr.bf16.mxu0 %v820
    %1076 = vmatpush1.bf16.msra.mxu0 %v819
    %1077 = vmatprep.subr.bf16.mxu0 %v822
    %1078 = vmatpush1.bf16.msra.mxu0 %v821
    %1079 = vmatprep.subr.bf16.mxu0 %v824
    %1080 = vmatpush1.bf16.msra.mxu0 %v823
    %1081 = vmatprep.subr.bf16.mxu0 %v826
    %1082 = vmatpush1.bf16.msra.mxu0 %v825
    %1083 = vmatprep.subr.bf16.mxu0 %v828
    %1084 = vmatpush1.bf16.msra.mxu0 %v827
    %1085 = vmatprep.subr.bf16.mxu0 %v830
    %1086 = vmatpush1.bf16.msra.mxu0 %v829
    %1087 = vmatprep.subr.bf16.mxu0 %v832
    %1088 = vmatpush1.bf16.msra.mxu0 %v831
    %1089 = vmatprep.subr.bf16.mxu0 %v834
    %1090 = vmatpush1.bf16.msra.mxu0 %v833
    %1091 = vmatprep.subr.bf16.mxu0 %v836
    %1092 = vmatpush1.bf16.msra.mxu0 %v835
    %1093 = vmatprep.subr.bf16.mxu0 %v838
    %1094 = vmatpush1.bf16.msra.mxu0 %v837
    %1095 = vmatprep.subr.bf16.mxu0 %v840
    %1096 = vmatpush1.bf16.msra.mxu0 %v839
    %1097 = vmatprep.mubr.bf16.mxu0 %v278
    %1098 = vmatmul.mubr.bf16.gmra.mrb[0].mxu0 %v277
    %v1099 = vpop.f32.mrb[0].mxu0
    %v1100 = vadd.f32 %v418, %v1099
    %v1101 = vpop.f32.mrb[0].mxu0
    %v1102 = vadd.f32 %v422, %v1101
    %v1103 = vpop.f32.mrb[0].mxu0
    %v1104 = vpop.f32.mrb[0].mxu0
    %1105 = vdwg.mxu0
    %1106 = vmatprep.subr.bf16.mxu0 %v842
    %1107 = vmatpush1.bf16.msra.mxu0 %v841
    %1108 = vmatprep.subr.bf16.mxu0 %v844
    %1109 = vmatpush1.bf16.msra.mxu0 %v843
    %1110 = vmatprep.subr.bf16.mxu0 %v846
    %1111 = vmatpush1.bf16.msra.mxu0 %v845
    %1112 = vmatprep.subr.bf16.mxu0 %v848
    %1113 = vmatpush1.bf16.msra.mxu0 %v847
    %1114 = vmatprep.subr.bf16.mxu0 %v850
    %1115 = vmatpush1.bf16.msra.mxu0 %v849
    %1116 = vmatprep.subr.bf16.mxu0 %v852
    %1117 = vmatpush1.bf16.msra.mxu0 %v851
    %1118 = vmatprep.subr.bf16.mxu0 %v854
    %1119 = vmatpush1.bf16.msra.mxu0 %v853
    %1120 = vmatprep.subr.bf16.mxu0 %v856
    %1121 = vmatpush1.bf16.msra.mxu0 %v855
    %1122 = vmatprep.subr.bf16.mxu0 %v858
    %1123 = vmatpush1.bf16.msra.mxu0 %v857
    %1124 = vmatprep.subr.bf16.mxu0 %v860
    %1125 = vmatpush1.bf16.msra.mxu0 %v859
    %1126 = vmatprep.subr.bf16.mxu0 %v862
    %1127 = vmatpush1.bf16.msra.mxu0 %v861
    %1128 = vmatprep.subr.bf16.mxu0 %v864
    %1129 = vmatpush1.bf16.msra.mxu0 %v863
    %1130 = vmatprep.subr.bf16.mxu0 %v866
    %1131 = vmatpush1.bf16.msra.mxu0 %v865
    %1132 = vmatprep.subr.bf16.mxu0 %v868
    %1133 = vmatpush1.bf16.msra.mxu0 %v867
    %1134 = vmatprep.subr.bf16.mxu0 %v870
    %1135 = vmatpush1.bf16.msra.mxu0 %v869
    %1136 = vmatprep.subr.bf16.mxu0 %v872
    %1137 = vmatpush1.bf16.msra.mxu0 %v871
    %1138 = vmatprep.mubr.bf16.mxu0 %v280
    %1139 = vmatmul.mubr.bf16.gmra.mrb[0].mxu0 %v279
    %v1140 = vpop.f32.mrb[0].mxu0
    %v1141 = vadd.f32 %v1100, %v1140
    %v1142 = vpop.f32.mrb[0].mxu0
    %v1143 = vadd.f32 %v1102, %v1142
    %v1144 = vpop.f32.mrb[0].mxu0
    %v1145 = vpop.f32.mrb[0].mxu0
    %1146 = vdwg.mxu0
    %1147 = vmatprep.subr.bf16.mxu0 %v874
    %1148 = vmatpush1.bf16.msra.mxu0 %v873
    %1149 = vmatprep.subr.bf16.mxu0 %v876
    %1150 = vmatpush1.bf16.msra.mxu0 %v875
    %1151 = vmatprep.subr.bf16.mxu0 %v878
    %1152 = vmatpush1.bf16.msra.mxu0 %v877
    %1153 = vmatprep.subr.bf16.mxu0 %v880
    %1154 = vmatpush1.bf16.msra.mxu0 %v879
    %1155 = vmatprep.subr.bf16.mxu0 %v882
    %1156 = vmatpush1.bf16.msra.mxu0 %v881
    %1157 = vmatprep.subr.bf16.mxu0 %v884
    %1158 = vmatpush1.bf16.msra.mxu0 %v883
    %1159 = vmatprep.subr.bf16.mxu0 %v886
    %1160 = vmatpush1.bf16.msra.mxu0 %v885
    %1161 = vmatprep.subr.bf16.mxu0 %v888
    %1162 = vmatpush1.bf16.msra.mxu0 %v887
    %1163 = vmatprep.subr.bf16.mxu0 %v890
    %1164 = vmatpush1.bf16.msra.mxu0 %v889
    %1165 = vmatprep.subr.bf16.mxu0 %v892
    %1166 = vmatpush1.bf16.msra.mxu0 %v891
    %1167 = vmatprep.subr.bf16.mxu0 %v894
    %1168 = vmatpush1.bf16.msra.mxu0 %v893
    %1169 = vmatprep.subr.bf16.mxu0 %v896
    %1170 = vmatpush1.bf16.msra.mxu0 %v895
    %1171 = vmatprep.subr.bf16.mxu0 %v898
    %1172 = vmatpush1.bf16.msra.mxu0 %v897
    %1173 = vmatprep.subr.bf16.mxu0 %v900
    %1174 = vmatpush1.bf16.msra.mxu0 %v899
    %1175 = vmatprep.subr.bf16.mxu0 %v902
    %1176 = vmatpush1.bf16.msra.mxu0 %v901
    %1177 = vmatprep.subr.bf16.mxu0 %v904
    %1178 = vmatpush1.bf16.msra.mxu0 %v903
    %1179 = vmatprep.mubr.bf16.mxu0 %v282
    %1180 = vmatmul.mubr.bf16.gmra.mrb[0].mxu0 %v281
    %v1181 = vpop.f32.mrb[0].mxu0
    %v1182 = vadd.f32 %v1141, %v1181
    %v1183 = vpop.f32.mrb[0].mxu0
    %v1184 = vadd.f32 %v1143, %v1183
    %v1185 = vpop.f32.mrb[0].mxu0
    %v1186 = vpop.f32.mrb[0].mxu0
    %1187 = vdwg.mxu0
    %1188 = vmatprep.subr.bf16.mxu0 %v906
    %1189 = vmatpush1.bf16.msra.mxu0 %v905
    %1190 = vmatprep.subr.bf16.mxu0 %v908
    %1191 = vmatpush1.bf16.msra.mxu0 %v907
    %1192 = vmatprep.subr.bf16.mxu0 %v910
    %1193 = vmatpush1.bf16.msra.mxu0 %v909
    %1194 = vmatprep.subr.bf16.mxu0 %v912
    %1195 = vmatpush1.bf16.msra.mxu0 %v911
    %1196 = vmatprep.subr.bf16.mxu0 %v914
    %1197 = vmatpush1.bf16.msra.mxu0 %v913
    %1198 = vmatprep.subr.bf16.mxu0 %v916
    %1199 = vmatpush1.bf16.msra.mxu0 %v915
    %1200 = vmatprep.subr.bf16.mxu0 %v918
    %1201 = vmatpush1.bf16.msra.mxu0 %v917
    %1202 = vmatprep.subr.bf16.mxu0 %v920
    %1203 = vmatpush1.bf16.msra.mxu0 %v919
    %1204 = vmatprep.subr.bf16.mxu0 %v922
    %1205 = vmatpush1.bf16.msra.mxu0 %v921
    %1206 = vmatprep.subr.bf16.mxu0 %v924
    %1207 = vmatpush1.bf16.msra.mxu0 %v923
    %1208 = vmatprep.subr.bf16.mxu0 %v926
    %1209 = vmatpush1.bf16.msra.mxu0 %v925
    %1210 = vmatprep.subr.bf16.mxu0 %v928
    %1211 = vmatpush1.bf16.msra.mxu0 %v927
    %1212 = vmatprep.subr.bf16.mxu0 %v930
    %1213 = vmatpush1.bf16.msra.mxu0 %v929
    %1214 = vmatprep.subr.bf16.mxu0 %v932
    %1215 = vmatpush1.bf16.msra.mxu0 %v931
    %1216 = vmatprep.subr.bf16.mxu0 %v934
    %1217 = vmatpush1.bf16.msra.mxu0 %v933
    %1218 = vmatprep.subr.bf16.mxu0 %v936
    %1219 = vmatpush1.bf16.msra.mxu0 %v935
    %1220 = vmatprep.mubr.bf16.mxu0 %v284
    %1221 = vmatmul.mubr.bf16.gmra.mrb[0].mxu0 %v283
    %v1222 = vpop.f32.mrb[0].mxu0
    %v1223 = vadd.f32 %v1182, %v1222
    %v1224 = vpop.f32.mrb[0].mxu0
    %v1225 = vadd.f32 %v1184, %v1224
    %v1226 = vpop.f32.mrb[0].mxu0
    %v1227 = vpop.f32.mrb[0].mxu0
    %1228 = vdwg.mxu0
    %v1229 = vmax.f32 %v1223, 0.0
    %v1230 = vmax.f32 %v1225, 0.0
    %v1231 = vpack.c.bf16 %v1229, %v1229
    %v1232 = vpack.c.bf16 %v1230, %v1230
    %v1233 = vld [vmem:[%s4] sm:$0xf]
    %v1234 = vld [vmem:[%s4 + $0x4] sm:$0xf]
    %v1235 = vld [vmem:[%s4 + $0x8] sm:$0xf]
    %v1236 = vld [vmem:[%s4 + $0xc] sm:$0xf]
    %v1237 = vld [vmem:[%s4 + $0x10] sm:$0xf]
    %v1238 = vld [vmem:[%s4 + $0x14] sm:$0xf]
    %v1239 = vld [vmem:[%s4 + $0x18] sm:$0xf]
    %v1240 = vld [vmem:[%s4 + $0x1c] sm:$0xf]
    %v1241 = vld [vmem:[%s4 + $0x20] sm:$0xf]
    %v1242 = vld [vmem:[%s4 + $0x24] sm:$0xf]
    %v1243 = vld [vmem:[%s4 + $0x28] sm:$0xf]
    %v1244 = vld [vmem:[%s4 + $0x2c] sm:$0xf]
    %v1245 = vld [vmem:[%s4 + $0x30] sm:$0xf]
    %v1246 = vld [vmem:[%s4 + $0x34] sm:$0xf]
    %v1247 = vld [vmem:[%s4 + $0x38] sm:$0xf]
    %v1248 = vld [vmem:[%s4 + $0x3c] sm:$0xf]
    %v1249 = vld [vmem:[%s4 + $0x40] sm:$0xf]
    %v1250 = vld [vmem:[%s4 + $0x44] sm:$0xf]
    %v1251 = vld [vmem:[%s4 + $0x48] sm:$0xf]
    %v1252 = vld [vmem:[%s4 + $0x4c] sm:$0xf]
    %v1253 = vld [vmem:[%s4 + $0x50] sm:$0xf]
    %v1254 = vld [vmem:[%s4 + $0x54] sm:$0xf]
    %v1255 = vld [vmem:[%s4 + $0x58] sm:$0xf]
    %v1256 = vld [vmem:[%s4 + $0x5c] sm:$0xf]
    %v1257 = vld [vmem:[%s4 + $0x60] sm:$0xf]
    %v1258 = vld [vmem:[%s4 + $0x64] sm:$0xf]
    %v1259 = vld [vmem:[%s4 + $0x68] sm:$0xf]
    %v1260 = vld [vmem:[%s4 + $0x6c] sm:$0xf]
    %v1261 = vld [vmem:[%s4 + $0x70] sm:$0xf]
    %v1262 = vld [vmem:[%s4 + $0x74] sm:$0xf]
    %v1263 = vld [vmem:[%s4 + $0x78] sm:$0xf]
    %v1264 = vld [vmem:[%s4 + $0x7c] sm:$0xf]
    %v1265 = vld [vmem:[%s5] sm:$0x1]
    %v1267 = vlaneseq
    %v1268 = vshrl.u32 %v1267, 7
    %v1269 = vsub.s32 0, %v1268
    %v1270 = vrot.slane %v1265, %v1269
    %v1304 = vunpack.c.l.b16 %v1233
    %v1305 = vunpack.c.l.b16 %v1234
    %v1306 = vunpack.c.l.b16 %v1235
    %v1307 = vunpack.c.l.b16 %v1236
    %v1308 = vunpack.c.l.b16 %v1237
    %v1309 = vunpack.c.l.b16 %v1238
    %v1310 = vunpack.c.l.b16 %v1239
    %v1311 = vunpack.c.l.b16 %v1240
    %v1312 = vunpack.c.l.b16 %v1241
    %v1313 = vunpack.c.l.b16 %v1242
    %v1314 = vunpack.c.l.b16 %v1243
    %v1315 = vunpack.c.l.b16 %v1244
    %v1316 = vunpack.c.l.b16 %v1245
    %v1317 = vunpack.c.l.b16 %v1246
    %v1318 = vunpack.c.l.b16 %v1247
    %v1319 = vunpack.c.l.b16 %v1248
    %v1320 = vunpack.c.l.b16 %v1249
    %v1321 = vunpack.c.l.b16 %v1250
    %v1322 = vunpack.c.l.b16 %v1251
    %v1323 = vunpack.c.l.b16 %v1252
    %v1324 = vunpack.c.l.b16 %v1253
    %v1325 = vunpack.c.l.b16 %v1254
    %v1326 = vunpack.c.l.b16 %v1255
    %v1327 = vunpack.c.l.b16 %v1256
    %v1328 = vunpack.c.l.b16 %v1257
    %v1329 = vunpack.c.l.b16 %v1258
    %v1330 = vunpack.c.l.b16 %v1259
    %v1331 = vunpack.c.l.b16 %v1260
    %v1332 = vunpack.c.l.b16 %v1261
    %v1333 = vunpack.c.l.b16 %v1262
    %v1334 = vunpack.c.l.b16 %v1263
    %v1335 = vunpack.c.l.b16 %v1264
    %v1336 = vpack.c.b16 %v1305, %v1304
    %v1337 = vpack.c.b16 %v1307, %v1306
    %v1338 = vpack.c.b16 %v1309, %v1308
    %v1339 = vpack.c.b16 %v1311, %v1310
    %v1340 = vpack.c.b16 %v1313, %v1312
    %v1341 = vpack.c.b16 %v1315, %v1314
    %v1342 = vpack.c.b16 %v1317, %v1316
    %v1343 = vpack.c.b16 %v1319, %v1318
    %v1344 = vpack.c.b16 %v1321, %v1320
    %v1345 = vpack.c.b16 %v1323, %v1322
    %v1346 = vpack.c.b16 %v1325, %v1324
    %v1347 = vpack.c.b16 %v1327, %v1326
    %v1348 = vpack.c.b16 %v1329, %v1328
    %v1349 = vpack.c.b16 %v1331, %v1330
    %v1350 = vpack.c.b16 %v1333, %v1332
    %v1351 = vpack.c.b16 %v1335, %v1334
    %1368 = vmatprep.subr.bf16.mxu0 0
    %1369 = vmatpush1.bf16.msra.mxu0 %v1336
    %1370 = vmatprep.subr.bf16.mxu0 0
    %1371 = vmatpush1.bf16.msra.mxu0 %v1337
    %1372 = vmatprep.subr.bf16.mxu0 0
    %1373 = vmatpush1.bf16.msra.mxu0 %v1338
    %1374 = vmatprep.subr.bf16.mxu0 0
    %1375 = vmatpush1.bf16.msra.mxu0 %v1339
    %1376 = vmatprep.subr.bf16.mxu0 0
    %1377 = vmatpush1.bf16.msra.mxu0 %v1340
    %1378 = vmatprep.subr.bf16.mxu0 0
    %1379 = vmatpush1.bf16.msra.mxu0 %v1341
    %1380 = vmatprep.subr.bf16.mxu0 0
    %1381 = vmatpush1.bf16.msra.mxu0 %v1342
    %1382 = vmatprep.subr.bf16.mxu0 0
    %1383 = vmatpush1.bf16.msra.mxu0 %v1343
    %1384 = vmatprep.subr.bf16.mxu0 0
    %1385 = vmatpush1.bf16.msra.mxu0 %v1344
    %1386 = vmatprep.subr.bf16.mxu0 0
    %1387 = vmatpush1.bf16.msra.mxu0 %v1345
    %1388 = vmatprep.subr.bf16.mxu0 0
    %1389 = vmatpush1.bf16.msra.mxu0 %v1346
    %1390 = vmatprep.subr.bf16.mxu0 0
    %1391 = vmatpush1.bf16.msra.mxu0 %v1347
    %1392 = vmatprep.subr.bf16.mxu0 0
    %1393 = vmatpush1.bf16.msra.mxu0 %v1348
    %1394 = vmatprep.subr.bf16.mxu0 0
    %1395 = vmatpush1.bf16.msra.mxu0 %v1349
    %1396 = vmatprep.subr.bf16.mxu0 0
    %1397 = vmatpush1.bf16.msra.mxu0 %v1350
    %1398 = vmatprep.subr.bf16.mxu0 0
    %1399 = vmatpush1.bf16.msra.mxu0 %v1351
    %1400 = vmatprep.mubr.bf16.mxu0 %v1232
    %1401 = vmatmul.mubr.bf16.gmra.mrb[0].mxu0 %v1231
    %v1402 = vpop.f32.mrb[0].mxu0
    %v1403 = vadd.f32 %v1270, %v1402
    %v1404 = vpop.f32.mrb[0].mxu0
    %v1405 = vpop.f32.mrb[0].mxu0
    %v1406 = vpop.f32.mrb[0].mxu0
    %1407 = vdwg.mxu0
    %v1408 = vmax.f32 %v1403, 0.0
    %v1409 = vpack.c.bf16 %v1408, %v1408
    %v1410 = vld [vmem:[%s6] sm:$0xf]
    %v1411 = vld [vmem:[%s6 + $0x4] sm:$0xf]
    %v1412 = vld [vmem:[%s6 + $0x8] sm:$0xf]
    %v1413 = vld [vmem:[%s6 + $0xc] sm:$0xf]
    %v1414 = vld [vmem:[%s6 + $0x10] sm:$0xf]
    %v1415 = vld [vmem:[%s6 + $0x14] sm:$0xf]
    %v1416 = vld [vmem:[%s6 + $0x18] sm:$0xf]
    %v1417 = vld [vmem:[%s6 + $0x1c] sm:$0xf]
    %v1418 = vld [vmem:[%s7] sm:$0x1]
    %v1420 = vlaneseq
    %v1421 = vshrl.u32 %v1420, 7
    %v1422 = vsub.s32 0, %v1421
    %v1423 = vrot.slane %v1418, %v1422
    %v1433 = vunpack.c.l.b16 %v1410
    %v1434 = vunpack.c.l.b16 %v1411
    %v1435 = vunpack.c.l.b16 %v1412
    %v1436 = vunpack.c.l.b16 %v1413
    %v1437 = vunpack.c.l.b16 %v1414
    %v1438 = vunpack.c.l.b16 %v1415
    %v1439 = vunpack.c.l.b16 %v1416
    %v1440 = vunpack.c.l.b16 %v1417
    %v1441 = vpack.c.b16 %v1434, %v1433
    %v1442 = vpack.c.b16 %v1436, %v1435
    %v1443 = vpack.c.b16 %v1438, %v1437
    %v1444 = vpack.c.b16 %v1440, %v1439
    %vm1449 = vcmask 523264
    %v1451 = vsel %vm1449, %v1409, 0
    %1453 = vmatprep.subr.bf16.mxu0 0
    %1454 = vmatpush1.bf16.msra.mxu0 %v1441
    %1455 = vmatprep.subr.bf16.mxu0 0
    %1456 = vmatpush1.bf16.msra.mxu0 %v1442
    %1457 = vmatprep.subr.bf16.mxu0 0
    %1458 = vmatpush1.bf16.msra.mxu0 %v1443
    %1459 = vmatprep.subr.bf16.mxu0 0
    %1460 = vmatpush1.bf16.msra.mxu0 %v1444
    %1461 = vmatprep.subr.bf16.mxu0 0
    %1462 = vmatpush1.bf16.msra.mxu0 0
    %1463 = vmatprep.subr.bf16.mxu0 0
    %1464 = vmatpush1.bf16.msra.mxu0 0
    %1465 = vmatprep.subr.bf16.mxu0 0
    %1466 = vmatpush1.bf16.msra.mxu0 0
    %1467 = vmatprep.subr.bf16.mxu0 0
    %1468 = vmatpush1.bf16.msra.mxu0 0
    %1469 = vmatprep.subr.bf16.mxu0 0
    %1470 = vmatpush1.bf16.msra.mxu0 0
    %1471 = vmatprep.subr.bf16.mxu0 0
    %1472 = vmatpush1.bf16.msra.mxu0 0
    %1473 = vmatprep.subr.bf16.mxu0 0
    %1474 = vmatpush1.bf16.msra.mxu0 0
    %1475 = vmatprep.subr.bf16.mxu0 0
    %1476 = vmatpush1.bf16.msra.mxu0 0
    %1477 = vmatprep.subr.bf16.mxu0 0
    %1478 = vmatpush1.bf16.msra.mxu0 0
    %1479 = vmatprep.subr.bf16.mxu0 0
    %1480 = vmatpush1.bf16.msra.mxu0 0
    %1481 = vmatprep.subr.bf16.mxu0 0
    %1482 = vmatpush1.bf16.msra.mxu0 0
    %1483 = vmatprep.subr.bf16.mxu0 0
    %1484 = vmatpush1.bf16.msra.mxu0 0
    %1485 = vmatprep.mubr.bf16.mxu0 0
    %1486 = vmatmul.mubr.bf16.gmra.mrb[0].mxu0 %v1451
    %v1487 = vpop.f32.mrb[0].mxu0
    %v1488 = vadd.f32 %v1423, %v1487
    %v1489 = vpop.f32.mrb[0].mxu0
    %v1490 = vpop.f32.mrb[0].mxu0
    %v1491 = vpop.f32.mrb[0].mxu0
    %1492 = vdwg.mxu0
    %v1493 = vmax.f32 %v1488, 0.0
    %v1494 = vpack.c.bf16 %v1493, %v1493
    %v1495 = vld [vmem:[%s8] sm:$0xf]
    %v1496 = vld [vmem:[%s8 + $0x4] sm:$0xf]
    %v1497 = vld [vmem:[%s9] sm:$0x1]
    %v1499 = vlaneseq
    %v1500 = vshrl.u32 %v1499, 7
    %v1501 = vsub.s32 0, %v1500
    %v1502 = vrot.slane %v1497, %v1501
    %v1506 = vunpack.c.l.b16 %v1495
    %v1507 = vunpack.c.l.b16 %v1496
    %v1508 = vpack.c.b16 %v1507, %v1506
    %vm1510 = vcmask 130048
    %v1512 = vsel %vm1510, %v1494, 0
    %1514 = vmatprep.subr.bf16.mxu0 0
    %1515 = vmatpush1.bf16.msra.mxu0 %v1508
    %1516 = vmatprep.subr.bf16.mxu0 0
    %1517 = vmatpush1.bf16.msra.mxu0 0
    %1518 = vmatprep.subr.bf16.mxu0 0
    %1519 = vmatpush1.bf16.msra.mxu0 0
    %1520 = vmatprep.subr.bf16.mxu0 0
    %1521 = vmatpush1.bf16.msra.mxu0 0
    %1522 = vmatprep.subr.bf16.mxu0 0
    %1523 = vmatpush1.bf16.msra.mxu0 0
    %1524 = vmatprep.subr.bf16.mxu0 0
    %1525 = vmatpush1.bf16.msra.mxu0 0
    %1526 = vmatprep.subr.bf16.mxu0 0
    %1527 = vmatpush1.bf16.msra.mxu0 0
    %1528 = vmatprep.subr.bf16.mxu0 0
    %1529 = vmatpush1.bf16.msra.mxu0 0
    %1530 = vmatprep.subr.bf16.mxu0 0
    %1531 = vmatpush1.bf16.msra.mxu0 0
    %1532 = vmatprep.subr.bf16.mxu0 0
    %1533 = vmatpush1.bf16.msra.mxu0 0
    %1534 = vmatprep.subr.bf16.mxu0 0
    %1535 = vmatpush1.bf16.msra.mxu0 0
    %1536 = vmatprep.subr.bf16.mxu0 0
    %1537 = vmatpush1.bf16.msra.mxu0 0
    %1538 = vmatprep.subr.bf16.mxu0 0
    %1539 = vmatpush1.bf16.msra.mxu0 0
    %1540 = vmatprep.subr.bf16.mxu0 0
    %1541 = vmatpush1.bf16.msra.mxu0 0
    %1542 = vmatprep.subr.bf16.mxu0 0
    %1543 = vmatpush1.bf16.msra.mxu0 0
    %1544 = vmatprep.subr.bf16.mxu0 0
    %1545 = vmatpush1.bf16.msra.mxu0 0
    %1546 = vmatprep.mubr.bf16.mxu0 0
    %1547 = vmatmul.mubr.bf16.gmra.mrb[0].mxu0 %v1512
    %v1548 = vpop.f32.mrb[0].mxu0
    %v1549 = vadd.f32 %v1502, %v1548
    %v1550 = vpop.f32.mrb[0].mxu0
    %v1551 = vpop.f32.mrb[0].mxu0
    %v1552 = vpop.f32.mrb[0].mxu0
    %1553 = vdwg.mxu0
    %v1554 = vmax.f32 %v1549, 0.0
    %v1555 = vpack.c.bf16 %v1554, %v1554
    %v1556 = vld [vmem:[%s10] sm:$0x3]
    %v1557 = vld [vmem:[#allocation2] sm:$0x1]
    %v1559 = vlaneseq
    %v1560 = vshrl.u32 %v1559, 7
    %v1561 = vsub.s32 0, %v1560
    %v1562 = vrot.slane %v1557, %v1561
    %vm1564 = vcmask 31744
    %v1566 = vsel %vm1564, %v1555, 0
    %vm1568 = vcmask 1041408
    %v1570 = vsel %vm1568, %v1556, 0
    %1572 = vmatprep.subr.bf16.mxu0 0
    %1573 = vmatpush1.bf16.msra.mxu0 %v1570
    %1574 = vmatprep.subr.bf16.mxu0 0
    %1575 = vmatpush1.bf16.msra.mxu0 0
    %1576 = vmatprep.subr.bf16.mxu0 0
    %1577 = vmatpush1.bf16.msra.mxu0 0
    %1578 = vmatprep.subr.bf16.mxu0 0
    %1579 = vmatpush1.bf16.msra.mxu0 0
    %1580 = vmatprep.subr.bf16.mxu0 0
    %1581 = vmatpush1.bf16.msra.mxu0 0
    %1582 = vmatprep.subr.bf16.mxu0 0
    %1583 = vmatpush1.bf16.msra.mxu0 0
    %1584 = vmatprep.subr.bf16.mxu0 0
    %1585 = vmatpush1.bf16.msra.mxu0 0
    %1586 = vmatprep.subr.bf16.mxu0 0
    %1587 = vmatpush1.bf16.msra.mxu0 0
    %1588 = vmatprep.subr.bf16.mxu0 0
    %1589 = vmatpush1.bf16.msra.mxu0 0
    %1590 = vmatprep.subr.bf16.mxu0 0
    %1591 = vmatpush1.bf16.msra.mxu0 0
    %1592 = vmatprep.subr.bf16.mxu0 0
    %1593 = vmatpush1.bf16.msra.mxu0 0
    %1594 = vmatprep.subr.bf16.mxu0 0
    %1595 = vmatpush1.bf16.msra.mxu0 0
    %1596 = vmatprep.subr.bf16.mxu0 0
    %1597 = vmatpush1.bf16.msra.mxu0 0
    %1598 = vmatprep.subr.bf16.mxu0 0
    %1599 = vmatpush1.bf16.msra.mxu0 0
    %1600 = vmatprep.subr.bf16.mxu0 0
    %1601 = vmatpush1.bf16.msra.mxu0 0
    %1602 = vmatprep.subr.bf16.mxu0 0
    %1603 = vmatpush1.bf16.msra.mxu0 0
    %1604 = vmatprep.mubr.bf16.mxu0 0
    %1605 = vmatmul.mubr.bf16.gmra.mrb[0].mxu0 %v1566
    %v1606 = vpop.f32.mrb[0].mxu0
    %v1607 = vadd.f32 %v1562, %v1606
    %v1608 = vpop.f32.mrb[0].mxu0
    %v1609 = vpop.f32.mrb[0].mxu0
    %v1610 = vpop.f32.mrb[0].mxu0
    %1611 = vdwg.mxu0
    %v1612 = vsub.f32 0.0, %v1607
    %v1613 = vmul.f32 %v1612, 1.442695
    %v1614 = vpow.pop %v1613
    %v1615 = vadd.f32 %v1614, 1.0
    %v1616 = vrcp.pop %v1615
    %vm1617 = vcmask 7168
    %1618 = vst.msk [vmem:[%s12] sm:$0xff] %vm1617, %v1616
    // Predicated region
    $region54: #{fused_forward.1} parent=1 // pred_check
      _
    $region55: #{fused_forward.1} parent=1 // pred_check_branch
      %1620 = sbr.rel (0) target = $region57
    $region56: #{fused_forward.1} parent=1 // pred_region
      _
    $region57: #{fused_forward.1} parent=1 // pred_fallthru
      _
    // Predicated region
    $region58: #{fused_forward.1} parent=1 // pred_check
      _
    $region59: #{fused_forward.1} parent=1 // pred_check_branch
      %1622 = sbr.rel (0) target = $region61
    $region60: #{fused_forward.1} parent=1 // pred_region
      _
    $region61: #{fused_forward.1} parent=1 // pred_fallthru
      _
    %1623 = vsyncpa [#allocation4], 1

</llo_original>
